<compile_context>
chip_gen: v7x
topology: tpu7x:2x2x1
jax: 0.10.0
libtpu: 0.0.40
codegen_flags: <defaults>
</compile_context>

<pallas_src>
import jax
import jax.numpy as jnp
from jax.experimental import pallas as pl
from jax.experimental.pallas import tpu as pltpu


# ---------------------------------------------------------------------------
# Fused sincos (shared Cody-Waite range reduction, cephes minimax polys).
# Valid for r >= 0 and r up to ~1e3 (PINN domain gives r <~ 50), VPU-only ops.
# ---------------------------------------------------------------------------
_TWO_OVER_PI = 0.636619772367581343
_PIO2_HI = 1.5703125                      # pi/2 split with short mantissas ->
_PIO2_MID = 4.83512878417968750e-04       # q * word is exact in f32 for the
_PIO2_LO = 3.13855707645416259766e-07     # q <= ~2^10 needed here.


def _sincos(r):
    q = jnp.floor(r * _TWO_OVER_PI + 0.5)          # r >= 0 -> round-half-up ok
    t = r - q * _PIO2_HI
    t = t - q * _PIO2_MID
    t = t - q * _PIO2_LO
    z = t * t
    # cephes sinf/cosf minimax polynomials on |t| <= pi/4 (~1 ulp).
    s = ((-1.9515295891e-4 * z + 8.3321608736e-3) * z - 1.6666654611e-1) * z * t + t
    c = ((2.443315711809948e-5 * z - 1.388731625493765e-3) * z
         + 4.166664568298827e-2) * z * z - 0.5 * z + 1.0
    k = q.astype(jnp.int32)
    swap = jnp.bitwise_and(k, 1) == 1               # q mod 4 in {1, 3}
    sin_r = jnp.where(swap, c, s)
    cos_r = jnp.where(swap, s, c)
    sin_neg = jnp.bitwise_and(k, 2) == 2            # q mod 4 in {2, 3}
    cos_neg = jnp.bitwise_and(k + 1, 2) == 2        # q mod 4 in {1, 2}
    sin_r = jnp.where(sin_neg, -sin_r, sin_r)
    cos_r = jnp.where(cos_neg, -cos_r, cos_r)
    return sin_r, cos_r


def _func2y_math(x, y):
    """Elementwise Func_2_y math in f32 (x, y already de-interleaved)."""
    xm2 = x - 2.0
    ym3 = y - 3.0
    y2 = y * y
    ym3_2 = ym3 * ym3
    r1 = xm2 * xm2 + y2          # (x-2)^2 + y^2
    r2 = x * x + ym3_2           # x^2 + (y-3)^2
    s1, c1 = _sincos(r1)
    s2, c2 = _sincos(r2)
    return 2.0 * (c1 + c2) - 4.0 * (y2 * s1 + ym3_2 * s2)


# ---------------------------------------------------------------------------
# Kernels.
# ---------------------------------------------------------------------------
def _deinterleave_strided(xy_ref, n_pairs):
    # Lane-strided ref loads (doc-blessed replacement for strided_load).
    x = xy_ref[:, pl.ds(0, n_pairs, 2)]
    y = xy_ref[:, pl.ds(1, n_pairs, 2)]
    return x, y


def _deinterleave_reshape(xy_ref, n_pairs):
    v = xy_ref[...]
    v3 = v.reshape(v.shape[0], n_pairs, 2)
    return v3[:, :, 0], v3[:, :, 1]


def _make_fused_kernel(deinterleave):
    def kernel(xy_ref, o_ref):
        n_pairs = o_ref.shape[-1]
        x, y = deinterleave(xy_ref, n_pairs)
        o_ref[...] = _func2y_math(
            x.astype(jnp.float32), y.astype(jnp.float32)
        ).astype(o_ref.dtype)
    return kernel


def _split_kernel(x_ref, y_ref, o_ref):
    o_ref[...] = _func2y_math(
        x_ref[...].astype(jnp.float32), y_ref[...].astype(jnp.float32)
    ).astype(o_ref.dtype)


# ---------------------------------------------------------------------------
# Tiling helpers.
# ---------------------------------------------------------------------------
def _row_tile(n_rows, quantum):
    """Row (sublane) tile: multiple of `quantum`, <=256, >=2 grid steps when possible."""
    if n_rows <= quantum:
        return n_rows                       # full-dim block is always legal
    half = ((n_rows // 2) // quantum) * quantum
    return max(quantum, min(256, half if half else quantum))


def _sublane_quantum(dtype):
    return 8 if jnp.dtype(dtype).itemsize >= 4 else 16


# ---------------------------------------------------------------------------
# Probe: pick an in-kernel de-interleave mechanism that actually lowers
# (and produces correct values) on this backend; cache per block shape.
# ---------------------------------------------------------------------------
_DEINTERLEAVE_CACHE = {}


def _pick_deinterleave(tb, lane_width, dtype):
    key = (int(tb), int(lane_width), jnp.dtype(dtype).name)
    if key in _DEINTERLEAVE_CACHE:
        return _DEINTERLEAVE_CACHE[key]
    n_pairs = lane_width // 2
    probe = jax.random.uniform(
        jax.random.PRNGKey(1), (tb, lane_width), jnp.float32, -3.0, 3.0
    ).astype(dtype)
    expect = _func2y_math(
        probe[:, 0::2].astype(jnp.float32), probe[:, 1::2].astype(jnp.float32)
    )
    chosen = None
    for fn in (_deinterleave_strided, _deinterleave_reshape):
        try:
            got = pl.pallas_call(
                _make_fused_kernel(fn),
                out_shape=jax.ShapeDtypeStruct((tb, n_pairs), dtype),
                grid=(1,),
                in_specs=[pl.BlockSpec((tb, lane_width), lambda i: (i, 0))],
                out_specs=pl.BlockSpec((tb, n_pairs), lambda i: (i, 0)),
            )(probe)
            got = jax.block_until_ready(got)
            if bool(jnp.allclose(got.astype(jnp.float32), expect,
                                 atol=1e-2, rtol=1e-2)):
                chosen = fn
                break
        except Exception:
            continue
    _DEINTERLEAVE_CACHE[key] = chosen
    return chosen


# ---------------------------------------------------------------------------
# Forward wrappers.
# ---------------------------------------------------------------------------
def _forward_split(x_eq):
    """Fallback: x/y split in XLA (one extra HBM pass), kernel is plain elementwise."""
    B, N, _ = x_eq.shape
    dtype = x_eq.dtype
    M = B * N
    lane = 1024 if M >= 1024 else 128
    x = x_eq[:, :, 0].reshape(M)
    y = x_eq[:, :, 1].reshape(M)
    rem = M % lane
    if rem:
        x = jnp.pad(x, (0, lane - rem))
        y = jnp.pad(y, (0, lane - rem))
    R = x.shape[0] // lane
    x2d = x.reshape(R, lane)
    y2d = y.reshape(R, lane)
    tb = _row_tile(R, _sublane_quantum(dtype))
    spec = pl.BlockSpec((tb, lane), lambda i: (i, 0))
    out2d = pl.pallas_call(
        _split_kernel,
        out_shape=jax.ShapeDtypeStruct((R, lane), dtype),
        grid=(pl.cdiv(R, tb),),
        in_specs=[spec, spec],
        out_specs=spec,
        compiler_params=pltpu.CompilerParams(
            dimension_semantics=("parallel",),
            allow_input_fusion=[True, True],   # let XLA fuse the slices in
        ),
    )(x2d, y2d)
    out = out2d.reshape(R * lane)
    if rem:
        out = out[:M]
    return out.reshape(B, N, 1)


def func_2_y_forward(x_eq):
    """Equivalent of Func_2_y().forward(x_eq) for x_eq of shape [B, N, 2]."""
    B, N, C2 = x_eq.shape
    assert C2 == 2, "x_eq last dim must be 2 (x, y coordinates)"
    dtype = x_eq.dtype
    M = B * N
    two_m = 2 * M

    # Lane width of the interleaved stream (pairs per row = lane/2, mult of 128).
    lane = 2048 if two_m >= 2048 else 256
    xy = x_eq.reshape(two_m)                 # metadata-only flatten
    rem = two_m % lane
    if rem:                                  # pad only when lane does not divide
        xy = jnp.pad(xy, (0, lane - rem))
    R = xy.shape[0] // lane
    xy2d = xy.reshape(R, lane)

    tb = _row_tile(R, _sublane_quantum(dtype))
    n_pairs = lane // 2

    deinterleave = _pick_deinterleave(tb, lane, dtype)
    if deinterleave is None:
        # TODO(synk): in-kernel lane de-interleave not supported by this Mosaic
        # build; fall back to the XLA-side x/y split (costs one extra HBM pass).
        return _forward_split(x_eq)

    out2d = pl.pallas_call(
        _make_fused_kernel(deinterleave),
        out_shape=jax.ShapeDtypeStruct((R, n_pairs), dtype),
        grid=(pl.cdiv(R, tb),),
        in_specs=[pl.BlockSpec((tb, lane), lambda i: (i, 0))],
        out_specs=pl.BlockSpec((tb, n_pairs), lambda i: (i, 0)),
        compiler_params=pltpu.CompilerParams(
            dimension_semantics=("parallel",),
        ),
    )(xy2d)

    out = out2d.reshape(R * n_pairs)
    if rem:
        out = out[:M]
    return out.reshape(B, N, 1)              # metadata-only unsqueeze


def func_2_y_reference(x_eq):
    """Pure-JAX reference mirroring the PyTorch forward exactly."""
    x = x_eq[:, :, 0][..., None]
    y = x_eq[:, :, 1][..., None]
    return (
        2 * jnp.cos((x - 2) ** 2 + y ** 2)
        - 4 * y ** 2 * jnp.sin((x - 2) ** 2 + y ** 2)
        + 2 * jnp.cos(x ** 2 + (y - 3) ** 2)
        - 4 * (y - 3) ** 2 * jnp.sin(x ** 2 + (y - 3) ** 2)
    )


if __name__ == "__main__":
    # Func_2_y has no learnable parameters; only the input x_eq = [B, N, 2].
    B, N = 8, 4096  # 32K collocation points -> [R=32, C=2048] stream, 2 grid steps

    key = jax.random.PRNGKey(0)
    x_eq = jax.random.uniform(
        key, (B, N, 2), dtype=jnp.float32, minval=-3.0, maxval=3.0
    )

    out = jax.jit(func_2_y_forward)(x_eq)
    out = jax.block_until_ready(out)

    ref = func_2_y_reference(x_eq)
    assert out.shape == (B, N, 1), out.shape
    # 5e-4 absolute covers the worst-case gap between two few-ulp sin/cos
    # implementations scaled by the 4*(y^2 + (y-3)^2) <= 180 coefficients.
    max_err = float(jnp.max(jnp.abs(out - ref)))
    assert jnp.allclose(out, ref, atol=5e-4, rtol=1e-4), f"max abs err {max_err}"

    print("KERNEL_OK")
</pallas_src>

<mosaic_0001>
module attributes {stable_mosaic.version = 11 : i64} {
  func.func @_split_kernel(%arg0: i32, %arg1: memref<16x1024xf32, #tpu.memory_space<vmem>>, %arg2: memref<16x1024xf32, #tpu.memory_space<vmem>>, %arg3: memref<16x1024xf32, #tpu.memory_space<vmem>>) attributes {dimension_semantics = [#tpu.dimension_semantics<parallel>], iteration_bounds = array<i64: 2>, scalar_prefetch = 0 : i64, scratch_operands = 0 : i64, tpu.core_type = #tpu.core_type<tc>, window_params = [{transform_indices = @transform_0, window_bounds = array<i64: 16, 1024>}, {transform_indices = @transform_1, window_bounds = array<i64: 16, 1024>}, {transform_indices = @transform_2, window_bounds = array<i64: 16, 1024>}]} {
    %c0 = arith.constant 0 : index
    %c0_0 = arith.constant 0 : index
    %0 = vector.load %arg1[%c0, %c0_0] : memref<16x1024xf32, #tpu.memory_space<vmem>>, vector<16x1024xf32>
    %c0_1 = arith.constant 0 : index
    %c0_2 = arith.constant 0 : index
    %1 = vector.load %arg2[%c0_1, %c0_2] : memref<16x1024xf32, #tpu.memory_space<vmem>>, vector<16x1024xf32>
    %cst = arith.constant 2.000000e+00 : f32
    %2 = vector.broadcast %cst : f32 to vector<16x1024xf32>
    %3 = arith.subf %0, %2 : vector<16x1024xf32>
    %cst_3 = arith.constant 3.000000e+00 : f32
    %4 = vector.broadcast %cst_3 : f32 to vector<16x1024xf32>
    %5 = arith.subf %1, %4 : vector<16x1024xf32>
    %6 = arith.mulf %1, %1 : vector<16x1024xf32>
    %7 = arith.mulf %5, %5 : vector<16x1024xf32>
    %8 = arith.mulf %3, %3 : vector<16x1024xf32>
    %9 = arith.addf %8, %6 : vector<16x1024xf32>
    %10 = arith.mulf %0, %0 : vector<16x1024xf32>
    %11 = arith.addf %10, %7 : vector<16x1024xf32>
    %cst_4 = arith.constant 0.636619746 : f32
    %12 = vector.broadcast %cst_4 : f32 to vector<16x1024xf32>
    %13 = arith.mulf %9, %12 : vector<16x1024xf32>
    %cst_5 = arith.constant 5.000000e-01 : f32
    %14 = vector.broadcast %cst_5 : f32 to vector<16x1024xf32>
    %15 = arith.addf %13, %14 : vector<16x1024xf32>
    %16 = math.floor %15 : vector<16x1024xf32>
    %cst_6 = arith.constant 1.5703125 : f32
    %17 = vector.broadcast %cst_6 : f32 to vector<16x1024xf32>
    %18 = arith.mulf %16, %17 : vector<16x1024xf32>
    %19 = arith.subf %9, %18 : vector<16x1024xf32>
    %cst_7 = arith.constant 4.83512878E-4 : f32
    %20 = vector.broadcast %cst_7 : f32 to vector<16x1024xf32>
    %21 = arith.mulf %16, %20 : vector<16x1024xf32>
    %22 = arith.subf %19, %21 : vector<16x1024xf32>
    %cst_8 = arith.constant 3.13855708E-7 : f32
    %23 = vector.broadcast %cst_8 : f32 to vector<16x1024xf32>
    %24 = arith.mulf %16, %23 : vector<16x1024xf32>
    %25 = arith.subf %22, %24 : vector<16x1024xf32>
    %26 = arith.mulf %25, %25 : vector<16x1024xf32>
    %cst_9 = arith.constant -1.95152956E-4 : f32
    %27 = vector.broadcast %cst_9 : f32 to vector<16x1024xf32>
    %28 = arith.mulf %27, %26 : vector<16x1024xf32>
    %cst_10 = arith.constant 0.00833216123 : f32
    %29 = vector.broadcast %cst_10 : f32 to vector<16x1024xf32>
    %30 = arith.addf %28, %29 : vector<16x1024xf32>
    %31 = arith.mulf %30, %26 : vector<16x1024xf32>
    %cst_11 = arith.constant 0.166666552 : f32
    %32 = vector.broadcast %cst_11 : f32 to vector<16x1024xf32>
    %33 = arith.subf %31, %32 : vector<16x1024xf32>
    %34 = arith.mulf %33, %26 : vector<16x1024xf32>
    %35 = arith.mulf %34, %25 : vector<16x1024xf32>
    %36 = arith.addf %35, %25 : vector<16x1024xf32>
    %cst_12 = arith.constant 2.44331568E-5 : f32
    %37 = vector.broadcast %cst_12 : f32 to vector<16x1024xf32>
    %38 = arith.mulf %37, %26 : vector<16x1024xf32>
    %cst_13 = arith.constant 0.00138873165 : f32
    %39 = vector.broadcast %cst_13 : f32 to vector<16x1024xf32>
    %40 = arith.subf %38, %39 : vector<16x1024xf32>
    %41 = arith.mulf %40, %26 : vector<16x1024xf32>
    %cst_14 = arith.constant 0.0416666456 : f32
    %42 = vector.broadcast %cst_14 : f32 to vector<16x1024xf32>
    %43 = arith.addf %41, %42 : vector<16x1024xf32>
    %44 = arith.mulf %43, %26 : vector<16x1024xf32>
    %45 = arith.mulf %44, %26 : vector<16x1024xf32>
    %cst_15 = arith.constant 5.000000e-01 : f32
    %46 = vector.broadcast %cst_15 : f32 to vector<16x1024xf32>
    %47 = arith.mulf %46, %26 : vector<16x1024xf32>
    %48 = arith.subf %45, %47 : vector<16x1024xf32>
    %cst_16 = arith.constant 1.000000e+00 : f32
    %49 = vector.broadcast %cst_16 : f32 to vector<16x1024xf32>
    %50 = arith.addf %48, %49 : vector<16x1024xf32>
    %51 = arith.fptosi %16 : vector<16x1024xf32> to vector<16x1024xi32>
    %c1_i32 = arith.constant 1 : i32
    %52 = vector.broadcast %c1_i32 : i32 to vector<16x1024xi32>
    %53 = arith.andi %51, %52 : vector<16x1024xi32>
    %c1_i32_17 = arith.constant 1 : i32
    %54 = vector.broadcast %c1_i32_17 : i32 to vector<16x1024xi32>
    %55 = arith.cmpi eq, %53, %54 : vector<16x1024xi32>
    %56 = arith.select %55, %50, %36 : vector<16x1024xi1>, vector<16x1024xf32>
    %57 = arith.select %55, %36, %50 : vector<16x1024xi1>, vector<16x1024xf32>
    %c2_i32 = arith.constant 2 : i32
    %58 = vector.broadcast %c2_i32 : i32 to vector<16x1024xi32>
    %59 = arith.andi %51, %58 : vector<16x1024xi32>
    %c2_i32_18 = arith.constant 2 : i32
    %60 = vector.broadcast %c2_i32_18 : i32 to vector<16x1024xi32>
    %61 = arith.cmpi eq, %59, %60 : vector<16x1024xi32>
    %c1_i32_19 = arith.constant 1 : i32
    %62 = vector.broadcast %c1_i32_19 : i32 to vector<16x1024xi32>
    %63 = arith.addi %51, %62 : vector<16x1024xi32>
    %c2_i32_20 = arith.constant 2 : i32
    %64 = vector.broadcast %c2_i32_20 : i32 to vector<16x1024xi32>
    %65 = arith.andi %63, %64 : vector<16x1024xi32>
    %c2_i32_21 = arith.constant 2 : i32
    %66 = vector.broadcast %c2_i32_21 : i32 to vector<16x1024xi32>
    %67 = arith.cmpi eq, %65, %66 : vector<16x1024xi32>
    %cst_22 = arith.constant 0.000000e+00 : f32
    %68 = vector.broadcast %cst_22 : f32 to vector<16x1024xf32>
    %69 = arith.subf %68, %56 : vector<16x1024xf32>
    %70 = arith.select %61, %69, %56 : vector<16x1024xi1>, vector<16x1024xf32>
    %cst_23 = arith.constant 0.000000e+00 : f32
    %71 = vector.broadcast %cst_23 : f32 to vector<16x1024xf32>
    %72 = arith.subf %71, %57 : vector<16x1024xf32>
    %73 = arith.select %67, %72, %57 : vector<16x1024xi1>, vector<16x1024xf32>
    %cst_24 = arith.constant 0.636619746 : f32
    %74 = vector.broadcast %cst_24 : f32 to vector<16x1024xf32>
    %75 = arith.mulf %11, %74 : vector<16x1024xf32>
    %cst_25 = arith.constant 5.000000e-01 : f32
    %76 = vector.broadcast %cst_25 : f32 to vector<16x1024xf32>
    %77 = arith.addf %75, %76 : vector<16x1024xf32>
    %78 = math.floor %77 : vector<16x1024xf32>
    %cst_26 = arith.constant 1.5703125 : f32
    %79 = vector.broadcast %cst_26 : f32 to vector<16x1024xf32>
    %80 = arith.mulf %78, %79 : vector<16x1024xf32>
    %81 = arith.subf %11, %80 : vector<16x1024xf32>
    %cst_27 = arith.constant 4.83512878E-4 : f32
    %82 = vector.broadcast %cst_27 : f32 to vector<16x1024xf32>
    %83 = arith.mulf %78, %82 : vector<16x1024xf32>
    %84 = arith.subf %81, %83 : vector<16x1024xf32>
    %cst_28 = arith.constant 3.13855708E-7 : f32
    %85 = vector.broadcast %cst_28 : f32 to vector<16x1024xf32>
    %86 = arith.mulf %78, %85 : vector<16x1024xf32>
    %87 = arith.subf %84, %86 : vector<16x1024xf32>
    %88 = arith.mulf %87, %87 : vector<16x1024xf32>
    %cst_29 = arith.constant -1.95152956E-4 : f32
    %89 = vector.broadcast %cst_29 : f32 to vector<16x1024xf32>
    %90 = arith.mulf %89, %88 : vector<16x1024xf32>
    %cst_30 = arith.constant 0.00833216123 : f32
    %91 = vector.broadcast %cst_30 : f32 to vector<16x1024xf32>
    %92 = arith.addf %90, %91 : vector<16x1024xf32>
    %93 = arith.mulf %92, %88 : vector<16x1024xf32>
    %cst_31 = arith.constant 0.166666552 : f32
    %94 = vector.broadcast %cst_31 : f32 to vector<16x1024xf32>
    %95 = arith.subf %93, %94 : vector<16x1024xf32>
    %96 = arith.mulf %95, %88 : vector<16x1024xf32>
    %97 = arith.mulf %96, %87 : vector<16x1024xf32>
    %98 = arith.addf %97, %87 : vector<16x1024xf32>
    %cst_32 = arith.constant 2.44331568E-5 : f32
    %99 = vector.broadcast %cst_32 : f32 to vector<16x1024xf32>
    %100 = arith.mulf %99, %88 : vector<16x1024xf32>
    %cst_33 = arith.constant 0.00138873165 : f32
    %101 = vector.broadcast %cst_33 : f32 to vector<16x1024xf32>
    %102 = arith.subf %100, %101 : vector<16x1024xf32>
    %103 = arith.mulf %102, %88 : vector<16x1024xf32>
    %cst_34 = arith.constant 0.0416666456 : f32
    %104 = vector.broadcast %cst_34 : f32 to vector<16x1024xf32>
    %105 = arith.addf %103, %104 : vector<16x1024xf32>
    %106 = arith.mulf %105, %88 : vector<16x1024xf32>
    %107 = arith.mulf %106, %88 : vector<16x1024xf32>
    %cst_35 = arith.constant 5.000000e-01 : f32
    %108 = vector.broadcast %cst_35 : f32 to vector<16x1024xf32>
    %109 = arith.mulf %108, %88 : vector<16x1024xf32>
    %110 = arith.subf %107, %109 : vector<16x1024xf32>
    %cst_36 = arith.constant 1.000000e+00 : f32
    %111 = vector.broadcast %cst_36 : f32 to vector<16x1024xf32>
    %112 = arith.addf %110, %111 : vector<16x1024xf32>
    %113 = arith.fptosi %78 : vector<16x1024xf32> to vector<16x1024xi32>
    %c1_i32_37 = arith.constant 1 : i32
    %114 = vector.broadcast %c1_i32_37 : i32 to vector<16x1024xi32>
    %115 = arith.andi %113, %114 : vector<16x1024xi32>
    %c1_i32_38 = arith.constant 1 : i32
    %116 = vector.broadcast %c1_i32_38 : i32 to vector<16x1024xi32>
    %117 = arith.cmpi eq, %115, %116 : vector<16x1024xi32>
    %118 = arith.select %117, %112, %98 : vector<16x1024xi1>, vector<16x1024xf32>
    %119 = arith.select %117, %98, %112 : vector<16x1024xi1>, vector<16x1024xf32>
    %c2_i32_39 = arith.constant 2 : i32
    %120 = vector.broadcast %c2_i32_39 : i32 to vector<16x1024xi32>
    %121 = arith.andi %113, %120 : vector<16x1024xi32>
    %c2_i32_40 = arith.constant 2 : i32
    %122 = vector.broadcast %c2_i32_40 : i32 to vector<16x1024xi32>
    %123 = arith.cmpi eq, %121, %122 : vector<16x1024xi32>
    %c1_i32_41 = arith.constant 1 : i32
    %124 = vector.broadcast %c1_i32_41 : i32 to vector<16x1024xi32>
    %125 = arith.addi %113, %124 : vector<16x1024xi32>
    %c2_i32_42 = arith.constant 2 : i32
    %126 = vector.broadcast %c2_i32_42 : i32 to vector<16x1024xi32>
    %127 = arith.andi %125, %126 : vector<16x1024xi32>
    %c2_i32_43 = arith.constant 2 : i32
    %128 = vector.broadcast %c2_i32_43 : i32 to vector<16x1024xi32>
    %129 = arith.cmpi eq, %127, %128 : vector<16x1024xi32>
    %cst_44 = arith.constant 0.000000e+00 : f32
    %130 = vector.broadcast %cst_44 : f32 to vector<16x1024xf32>
    %131 = arith.subf %130, %118 : vector<16x1024xf32>
    %132 = arith.select %123, %131, %118 : vector<16x1024xi1>, vector<16x1024xf32>
    %cst_45 = arith.constant 0.000000e+00 : f32
    %133 = vector.broadcast %cst_45 : f32 to vector<16x1024xf32>
    %134 = arith.subf %133, %119 : vector<16x1024xf32>
    %135 = arith.select %129, %134, %119 : vector<16x1024xi1>, vector<16x1024xf32>
    %136 = arith.addf %73, %135 : vector<16x1024xf32>
    %cst_46 = arith.constant 2.000000e+00 : f32
    %137 = vector.broadcast %cst_46 : f32 to vector<16x1024xf32>
    %138 = arith.mulf %137, %136 : vector<16x1024xf32>
    %139 = arith.mulf %6, %70 : vector<16x1024xf32>
    %140 = arith.mulf %7, %132 : vector<16x1024xf32>
    %141 = arith.addf %139, %140 : vector<16x1024xf32>
    %cst_47 = arith.constant 4.000000e+00 : f32
    %142 = vector.broadcast %cst_47 : f32 to vector<16x1024xf32>
    %143 = arith.mulf %142, %141 : vector<16x1024xf32>
    %144 = arith.subf %138, %143 : vector<16x1024xf32>
    %c0_48 = arith.constant 0 : index
    %c0_49 = arith.constant 0 : index
    %145 = vector.load %arg3[%c0_48, %c0_49] : memref<16x1024xf32, #tpu.memory_space<vmem>>, vector<16x1024xf32>
    tpu.vector_store %arg3[%c0_48, %c0_49], %144 {strides = array<i32>} : memref<16x1024xf32, #tpu.memory_space<vmem>>, vector<16x1024xf32>,
    return
  }
  func.func @transform_0(%arg0: i32) -> (i32, i32) {
    %c0_i32 = arith.constant 0 : i32
    %c0_i32_0 = arith.constant 0 : i32
    return %arg0, %c0_i32 : i32, i32
  }
  func.func @transform_1(%arg0: i32) -> (i32, i32) {
    %c0_i32 = arith.constant 0 : i32
    %c0_i32_0 = arith.constant 0 : i32
    return %arg0, %c0_i32 : i32, i32
  }
  func.func @transform_2(%arg0: i32) -> (i32, i32) {
    %c0_i32 = arith.constant 0 : i32
    %c0_i32_0 = arith.constant 0 : i32
    return %arg0, %c0_i32 : i32, i32
  }
}

</mosaic_0001>

<llo_original>
// kernel: squeeze.3
$region0: #{squeeze.3}
  %s0 = inlined_call_operand.vmem [shape: f32[8,4096], index: 0, kind: input, shape index: {}]
  %s1 = inlined_call_operand.vmem [shape: f32[32,1024], index: 1, kind: output, shape index: {}]
  %v2 = vld [vmem:[%s0] sm:$0xff]
  %3 = vst [vmem:[%s1] ss:$4 sm:$0x3] %v2
  %s4 = scalar_lea.vmem %s1, 56
  %5 = vst [vmem:[%s4] ss:$4 sm:$0xc] %v2
  %s6 = scalar_lea.vmem %s1, 112
  %7 = vst [vmem:[%s6] ss:$4 sm:$0x30] %v2
  %s8 = scalar_lea.vmem %s1, 168
  %9 = vst [vmem:[%s8] ss:$4 sm:$0xc0] %v2
  %s10 = scalar_lea.vmem %s0, 8
  %v11 = vld [vmem:[%s10] sm:$0xff]
  %s12 = scalar_lea.vmem %s1, 8
  %13 = vst [vmem:[%s12] ss:$4 sm:$0x3] %v11
  %s14 = scalar_lea.vmem %s1, 64
  %15 = vst [vmem:[%s14] ss:$4 sm:$0xc] %v11
  %s16 = scalar_lea.vmem %s1, 120
  %17 = vst [vmem:[%s16] ss:$4 sm:$0x30] %v11
  %s18 = scalar_lea.vmem %s1, 176
  %19 = vst [vmem:[%s18] ss:$4 sm:$0xc0] %v11
  %s20 = scalar_lea.vmem %s0, 16
  %v21 = vld [vmem:[%s20] sm:$0xff]
  %s22 = scalar_lea.vmem %s1, 16
  %23 = vst [vmem:[%s22] ss:$4 sm:$0x3] %v21
  %s24 = scalar_lea.vmem %s1, 72
  %25 = vst [vmem:[%s24] ss:$4 sm:$0xc] %v21
  %s26 = scalar_lea.vmem %s1, 128
  %27 = vst [vmem:[%s26] ss:$4 sm:$0x30] %v21
  %s28 = scalar_lea.vmem %s1, 184
  %29 = vst [vmem:[%s28] ss:$4 sm:$0xc0] %v21
  %s30 = scalar_lea.vmem %s0, 24
  %v31 = vld [vmem:[%s30] sm:$0xff]
  %s32 = scalar_lea.vmem %s1, 24
  %33 = vst [vmem:[%s32] ss:$4 sm:$0x3] %v31
  %s34 = scalar_lea.vmem %s1, 80
  %35 = vst [vmem:[%s34] ss:$4 sm:$0xc] %v31
  %s36 = scalar_lea.vmem %s1, 136
  %37 = vst [vmem:[%s36] ss:$4 sm:$0x30] %v31
  %s38 = scalar_lea.vmem %s1, 192
  %39 = vst [vmem:[%s38] ss:$4 sm:$0xc0] %v31
  %s40 = scalar_lea.vmem %s0, 32
  %v41 = vld [vmem:[%s40] sm:$0xff]
  %s42 = scalar_lea.vmem %s1, 32
  %43 = vst [vmem:[%s42] ss:$4 sm:$0x3] %v41
  %s44 = scalar_lea.vmem %s1, 88
  %45 = vst [vmem:[%s44] ss:$4 sm:$0xc] %v41
  %s46 = scalar_lea.vmem %s1, 144
  %47 = vst [vmem:[%s46] ss:$4 sm:$0x30] %v41
  %s48 = scalar_lea.vmem %s1, 200
  %49 = vst [vmem:[%s48] ss:$4 sm:$0xc0] %v41
  %s50 = scalar_lea.vmem %s0, 40
  %v51 = vld [vmem:[%s50] sm:$0xff]
  %s52 = scalar_lea.vmem %s1, 40
  %53 = vst [vmem:[%s52] ss:$4 sm:$0x3] %v51
  %s54 = scalar_lea.vmem %s1, 96
  %55 = vst [vmem:[%s54] ss:$4 sm:$0xc] %v51
  %s56 = scalar_lea.vmem %s1, 152
  %57 = vst [vmem:[%s56] ss:$4 sm:$0x30] %v51
  %s58 = scalar_lea.vmem %s1, 208
  %59 = vst [vmem:[%s58] ss:$4 sm:$0xc0] %v51
  %s60 = scalar_lea.vmem %s0, 48
  %v61 = vld [vmem:[%s60] sm:$0xff]
  %s62 = scalar_lea.vmem %s1, 48
  %63 = vst [vmem:[%s62] ss:$4 sm:$0x3] %v61
  %s64 = scalar_lea.vmem %s1, 104
  %65 = vst [vmem:[%s64] ss:$4 sm:$0xc] %v61
  %s66 = scalar_lea.vmem %s1, 160
  %67 = vst [vmem:[%s66] ss:$4 sm:$0x30] %v61
  %s68 = scalar_lea.vmem %s1, 216
  %69 = vst [vmem:[%s68] ss:$4 sm:$0xc0] %v61
  %s70 = scalar_lea.vmem %s0, 56
  %v71 = vld [vmem:[%s70] sm:$0xff]
  %s72 = scalar_lea.vmem %s1, 56
  %73 = vst [vmem:[%s72] ss:$4 sm:$0x3] %v71
  %s74 = scalar_lea.vmem %s1, 112
  %75 = vst [vmem:[%s74] ss:$4 sm:$0xc] %v71
  %s76 = scalar_lea.vmem %s1, 168
  %77 = vst [vmem:[%s76] ss:$4 sm:$0x30] %v71
  %s78 = scalar_lea.vmem %s1, 224
  %79 = vst [vmem:[%s78] ss:$4 sm:$0xc0] %v71
  %s80 = scalar_lea.vmem %s0, 64
  %v81 = vld [vmem:[%s80] sm:$0xff]
  %s82 = scalar_lea.vmem %s1, 1
  %83 = vst [vmem:[%s82] ss:$4 sm:$0x3] %v81
  %s84 = scalar_lea.vmem %s1, 57
  %85 = vst [vmem:[%s84] ss:$4 sm:$0xc] %v81
  %s86 = scalar_lea.vmem %s1, 113
  %87 = vst [vmem:[%s86] ss:$4 sm:$0x30] %v81
  %s88 = scalar_lea.vmem %s1, 169
  %89 = vst [vmem:[%s88] ss:$4 sm:$0xc0] %v81
  %s90 = scalar_lea.vmem %s0, 72
  %v91 = vld [vmem:[%s90] sm:$0xff]
  %s92 = scalar_lea.vmem %s1, 9
  %93 = vst [vmem:[%s92] ss:$4 sm:$0x3] %v91
  %s94 = scalar_lea.vmem %s1, 65
  %95 = vst [vmem:[%s94] ss:$4 sm:$0xc] %v91
  %s96 = scalar_lea.vmem %s1, 121
  %97 = vst [vmem:[%s96] ss:$4 sm:$0x30] %v91
  %s98 = scalar_lea.vmem %s1, 177
  %99 = vst [vmem:[%s98] ss:$4 sm:$0xc0] %v91
  %s100 = scalar_lea.vmem %s0, 80
  %v101 = vld [vmem:[%s100] sm:$0xff]
  %s102 = scalar_lea.vmem %s1, 17
  %103 = vst [vmem:[%s102] ss:$4 sm:$0x3] %v101
  %s104 = scalar_lea.vmem %s1, 73
  %105 = vst [vmem:[%s104] ss:$4 sm:$0xc] %v101
  %s106 = scalar_lea.vmem %s1, 129
  %107 = vst [vmem:[%s106] ss:$4 sm:$0x30] %v101
  %s108 = scalar_lea.vmem %s1, 185
  %109 = vst [vmem:[%s108] ss:$4 sm:$0xc0] %v101
  %s110 = scalar_lea.vmem %s0, 88
  %v111 = vld [vmem:[%s110] sm:$0xff]
  %s112 = scalar_lea.vmem %s1, 25
  %113 = vst [vmem:[%s112] ss:$4 sm:$0x3] %v111
  %s114 = scalar_lea.vmem %s1, 81
  %115 = vst [vmem:[%s114] ss:$4 sm:$0xc] %v111
  %s116 = scalar_lea.vmem %s1, 137
  %117 = vst [vmem:[%s116] ss:$4 sm:$0x30] %v111
  %s118 = scalar_lea.vmem %s1, 193
  %119 = vst [vmem:[%s118] ss:$4 sm:$0xc0] %v111
  %s120 = scalar_lea.vmem %s0, 96
  %v121 = vld [vmem:[%s120] sm:$0xff]
  %s122 = scalar_lea.vmem %s1, 33
  %123 = vst [vmem:[%s122] ss:$4 sm:$0x3] %v121
  %s124 = scalar_lea.vmem %s1, 89
  %125 = vst [vmem:[%s124] ss:$4 sm:$0xc] %v121
  %s126 = scalar_lea.vmem %s1, 145
  %127 = vst [vmem:[%s126] ss:$4 sm:$0x30] %v121
  %s128 = scalar_lea.vmem %s1, 201
  %129 = vst [vmem:[%s128] ss:$4 sm:$0xc0] %v121
  %s130 = scalar_lea.vmem %s0, 104
  %v131 = vld [vmem:[%s130] sm:$0xff]
  %s132 = scalar_lea.vmem %s1, 41
  %133 = vst [vmem:[%s132] ss:$4 sm:$0x3] %v131
  %s134 = scalar_lea.vmem %s1, 97
  %135 = vst [vmem:[%s134] ss:$4 sm:$0xc] %v131
  %s136 = scalar_lea.vmem %s1, 153
  %137 = vst [vmem:[%s136] ss:$4 sm:$0x30] %v131
  %s138 = scalar_lea.vmem %s1, 209
  %139 = vst [vmem:[%s138] ss:$4 sm:$0xc0] %v131
  %s140 = scalar_lea.vmem %s0, 112
  %v141 = vld [vmem:[%s140] sm:$0xff]
  %s142 = scalar_lea.vmem %s1, 49
  %143 = vst [vmem:[%s142] ss:$4 sm:$0x3] %v141
  %s144 = scalar_lea.vmem %s1, 105
  %145 = vst [vmem:[%s144] ss:$4 sm:$0xc] %v141
  %s146 = scalar_lea.vmem %s1, 161
  %147 = vst [vmem:[%s146] ss:$4 sm:$0x30] %v141
  %s148 = scalar_lea.vmem %s1, 217
  %149 = vst [vmem:[%s148] ss:$4 sm:$0xc0] %v141
  %s150 = scalar_lea.vmem %s0, 120
  %v151 = vld [vmem:[%s150] sm:$0xff]
  %s152 = scalar_lea.vmem %s1, 57
  %153 = vst [vmem:[%s152] ss:$4 sm:$0x3] %v151
  %s154 = scalar_lea.vmem %s1, 113
  %155 = vst [vmem:[%s154] ss:$4 sm:$0xc] %v151
  %s156 = scalar_lea.vmem %s1, 169
  %157 = vst [vmem:[%s156] ss:$4 sm:$0x30] %v151
  %s158 = scalar_lea.vmem %s1, 225
  %159 = vst [vmem:[%s158] ss:$4 sm:$0xc0] %v151
  %s160 = scalar_lea.vmem %s0, 128
  %v161 = vld [vmem:[%s160] sm:$0xff]
  %s162 = scalar_lea.vmem %s1, 2
  %163 = vst [vmem:[%s162] ss:$4 sm:$0x3] %v161
  %s164 = scalar_lea.vmem %s1, 58
  %165 = vst [vmem:[%s164] ss:$4 sm:$0xc] %v161
  %s166 = scalar_lea.vmem %s1, 114
  %167 = vst [vmem:[%s166] ss:$4 sm:$0x30] %v161
  %s168 = scalar_lea.vmem %s1, 170
  %169 = vst [vmem:[%s168] ss:$4 sm:$0xc0] %v161
  %s170 = scalar_lea.vmem %s0, 136
  %v171 = vld [vmem:[%s170] sm:$0xff]
  %s172 = scalar_lea.vmem %s1, 10
  %173 = vst [vmem:[%s172] ss:$4 sm:$0x3] %v171
  %s174 = scalar_lea.vmem %s1, 66
  %175 = vst [vmem:[%s174] ss:$4 sm:$0xc] %v171
  %s176 = scalar_lea.vmem %s1, 122
  %177 = vst [vmem:[%s176] ss:$4 sm:$0x30] %v171
  %s178 = scalar_lea.vmem %s1, 178
  %179 = vst [vmem:[%s178] ss:$4 sm:$0xc0] %v171
  %s180 = scalar_lea.vmem %s0, 144
  %v181 = vld [vmem:[%s180] sm:$0xff]
  %s182 = scalar_lea.vmem %s1, 18
  %183 = vst [vmem:[%s182] ss:$4 sm:$0x3] %v181
  %s184 = scalar_lea.vmem %s1, 74
  %185 = vst [vmem:[%s184] ss:$4 sm:$0xc] %v181
  %s186 = scalar_lea.vmem %s1, 130
  %187 = vst [vmem:[%s186] ss:$4 sm:$0x30] %v181
  %s188 = scalar_lea.vmem %s1, 186
  %189 = vst [vmem:[%s188] ss:$4 sm:$0xc0] %v181
  %s190 = scalar_lea.vmem %s0, 152
  %v191 = vld [vmem:[%s190] sm:$0xff]
  %s192 = scalar_lea.vmem %s1, 26
  %193 = vst [vmem:[%s192] ss:$4 sm:$0x3] %v191
  %s194 = scalar_lea.vmem %s1, 82
  %195 = vst [vmem:[%s194] ss:$4 sm:$0xc] %v191
  %s196 = scalar_lea.vmem %s1, 138
  %197 = vst [vmem:[%s196] ss:$4 sm:$0x30] %v191
  %s198 = scalar_lea.vmem %s1, 194
  %199 = vst [vmem:[%s198] ss:$4 sm:$0xc0] %v191
  %s200 = scalar_lea.vmem %s0, 160
  %v201 = vld [vmem:[%s200] sm:$0xff]
  %s202 = scalar_lea.vmem %s1, 34
  %203 = vst [vmem:[%s202] ss:$4 sm:$0x3] %v201
  %s204 = scalar_lea.vmem %s1, 90
  %205 = vst [vmem:[%s204] ss:$4 sm:$0xc] %v201
  %s206 = scalar_lea.vmem %s1, 146
  %207 = vst [vmem:[%s206] ss:$4 sm:$0x30] %v201
  %s208 = scalar_lea.vmem %s1, 202
  %209 = vst [vmem:[%s208] ss:$4 sm:$0xc0] %v201
  %s210 = scalar_lea.vmem %s0, 168
  %v211 = vld [vmem:[%s210] sm:$0xff]
  %s212 = scalar_lea.vmem %s1, 42
  %213 = vst [vmem:[%s212] ss:$4 sm:$0x3] %v211
  %s214 = scalar_lea.vmem %s1, 98
  %215 = vst [vmem:[%s214] ss:$4 sm:$0xc] %v211
  %s216 = scalar_lea.vmem %s1, 154
  %217 = vst [vmem:[%s216] ss:$4 sm:$0x30] %v211
  %s218 = scalar_lea.vmem %s1, 210
  %219 = vst [vmem:[%s218] ss:$4 sm:$0xc0] %v211
  %s220 = scalar_lea.vmem %s0, 176
  %v221 = vld [vmem:[%s220] sm:$0xff]
  %s222 = scalar_lea.vmem %s1, 50
  %223 = vst [vmem:[%s222] ss:$4 sm:$0x3] %v221
  %s224 = scalar_lea.vmem %s1, 106
  %225 = vst [vmem:[%s224] ss:$4 sm:$0xc] %v221
  %s226 = scalar_lea.vmem %s1, 162
  %227 = vst [vmem:[%s226] ss:$4 sm:$0x30] %v221
  %s228 = scalar_lea.vmem %s1, 218
  %229 = vst [vmem:[%s228] ss:$4 sm:$0xc0] %v221
  %s230 = scalar_lea.vmem %s0, 184
  %v231 = vld [vmem:[%s230] sm:$0xff]
  %s232 = scalar_lea.vmem %s1, 58
  %233 = vst [vmem:[%s232] ss:$4 sm:$0x3] %v231
  %s234 = scalar_lea.vmem %s1, 114
  %235 = vst [vmem:[%s234] ss:$4 sm:$0xc] %v231
  %s236 = scalar_lea.vmem %s1, 170
  %237 = vst [vmem:[%s236] ss:$4 sm:$0x30] %v231
  %s238 = scalar_lea.vmem %s1, 226
  %239 = vst [vmem:[%s238] ss:$4 sm:$0xc0] %v231
  %s240 = scalar_lea.vmem %s0, 192
  %v241 = vld [vmem:[%s240] sm:$0xff]
  %s242 = scalar_lea.vmem %s1, 3
  %243 = vst [vmem:[%s242] ss:$4 sm:$0x3] %v241
  %s244 = scalar_lea.vmem %s1, 59
  %245 = vst [vmem:[%s244] ss:$4 sm:$0xc] %v241
  %s246 = scalar_lea.vmem %s1, 115
  %247 = vst [vmem:[%s246] ss:$4 sm:$0x30] %v241
  %s248 = scalar_lea.vmem %s1, 171
  %249 = vst [vmem:[%s248] ss:$4 sm:$0xc0] %v241
  %s250 = scalar_lea.vmem %s0, 200
  %v251 = vld [vmem:[%s250] sm:$0xff]
  %s252 = scalar_lea.vmem %s1, 11
  %253 = vst [vmem:[%s252] ss:$4 sm:$0x3] %v251
  %s254 = scalar_lea.vmem %s1, 67
  %255 = vst [vmem:[%s254] ss:$4 sm:$0xc] %v251
  %s256 = scalar_lea.vmem %s1, 123
  %257 = vst [vmem:[%s256] ss:$4 sm:$0x30] %v251
  %s258 = scalar_lea.vmem %s1, 179
  %259 = vst [vmem:[%s258] ss:$4 sm:$0xc0] %v251
  %s260 = scalar_lea.vmem %s0, 208
  %v261 = vld [vmem:[%s260] sm:$0xff]
  %s262 = scalar_lea.vmem %s1, 19
  %263 = vst [vmem:[%s262] ss:$4 sm:$0x3] %v261
  %s264 = scalar_lea.vmem %s1, 75
  %265 = vst [vmem:[%s264] ss:$4 sm:$0xc] %v261
  %s266 = scalar_lea.vmem %s1, 131
  %267 = vst [vmem:[%s266] ss:$4 sm:$0x30] %v261
  %s268 = scalar_lea.vmem %s1, 187
  %269 = vst [vmem:[%s268] ss:$4 sm:$0xc0] %v261
  %s270 = scalar_lea.vmem %s0, 216
  %v271 = vld [vmem:[%s270] sm:$0xff]
  %s272 = scalar_lea.vmem %s1, 27
  %273 = vst [vmem:[%s272] ss:$4 sm:$0x3] %v271
  %s274 = scalar_lea.vmem %s1, 83
  %275 = vst [vmem:[%s274] ss:$4 sm:$0xc] %v271
  %s276 = scalar_lea.vmem %s1, 139
  %277 = vst [vmem:[%s276] ss:$4 sm:$0x30] %v271
  %s278 = scalar_lea.vmem %s1, 195
  %279 = vst [vmem:[%s278] ss:$4 sm:$0xc0] %v271
  %s280 = scalar_lea.vmem %s0, 224
  %v281 = vld [vmem:[%s280] sm:$0xff]
  %s282 = scalar_lea.vmem %s1, 35
  %283 = vst [vmem:[%s282] ss:$4 sm:$0x3] %v281
  %s284 = scalar_lea.vmem %s1, 91
  %285 = vst [vmem:[%s284] ss:$4 sm:$0xc] %v281
  %s286 = scalar_lea.vmem %s1, 147
  %287 = vst [vmem:[%s286] ss:$4 sm:$0x30] %v281
  %s288 = scalar_lea.vmem %s1, 203
  %289 = vst [vmem:[%s288] ss:$4 sm:$0xc0] %v281
  %s290 = scalar_lea.vmem %s0, 232
  %v291 = vld [vmem:[%s290] sm:$0xff]
  %s292 = scalar_lea.vmem %s1, 43
  %293 = vst [vmem:[%s292] ss:$4 sm:$0x3] %v291
  %s294 = scalar_lea.vmem %s1, 99
  %295 = vst [vmem:[%s294] ss:$4 sm:$0xc] %v291
  %s296 = scalar_lea.vmem %s1, 155
  %297 = vst [vmem:[%s296] ss:$4 sm:$0x30] %v291
  %s298 = scalar_lea.vmem %s1, 211
  %299 = vst [vmem:[%s298] ss:$4 sm:$0xc0] %v291
  %s300 = scalar_lea.vmem %s0, 240
  %v301 = vld [vmem:[%s300] sm:$0xff]
  %s302 = scalar_lea.vmem %s1, 51
  %303 = vst [vmem:[%s302] ss:$4 sm:$0x3] %v301
  %s304 = scalar_lea.vmem %s1, 107
  %305 = vst [vmem:[%s304] ss:$4 sm:$0xc] %v301
  %s306 = scalar_lea.vmem %s1, 163
  %307 = vst [vmem:[%s306] ss:$4 sm:$0x30] %v301
  %s308 = scalar_lea.vmem %s1, 219
  %309 = vst [vmem:[%s308] ss:$4 sm:$0xc0] %v301
  %s310 = scalar_lea.vmem %s0, 248
  %v311 = vld [vmem:[%s310] sm:$0xff]
  %s312 = scalar_lea.vmem %s1, 59
  %313 = vst [vmem:[%s312] ss:$4 sm:$0x3] %v311
  %s314 = scalar_lea.vmem %s1, 115
  %315 = vst [vmem:[%s314] ss:$4 sm:$0xc] %v311
  %s316 = scalar_lea.vmem %s1, 171
  %317 = vst [vmem:[%s316] ss:$4 sm:$0x30] %v311
  %s318 = scalar_lea.vmem %s1, 227
  %319 = vst [vmem:[%s318] ss:$4 sm:$0xc0] %v311

// kernel: func_2_y_forward.1
$region0: #{func_2_y_forward.1}
  #allocation0 [shape = 'u32[]', space=smem, size = 0x4, offset = 0x4, fixed_abs, tag = 'smem constant byte address 0x4 - core index']
  #allocation1 [shape = 'u32[144,128]{1,0:T(1,128)}', space=vmem, size = 0x12000, scoped, tag = 'internal scratch']
  %s0 = inlined_call_operand.vmem [shape: f32[32,1024], index: 0, kind: input, shape index: {}]
  %s1 = inlined_call_operand.vmem [shape: f32[32,1024], index: 1, kind: input, shape index: {}]
  %s2 = inlined_call_operand.vmem [shape: f32[32,1024], index: 2, kind: output, shape index: {}]
  %s3 = sld [smem:[#allocation0]]
  $region41: #{func_2_y_forward.1} parent=0
    _
  %s5 = ssub.s32 1, %s3
  %s6 = scalar_select 0, %s5, %s3
  loop: start=0, step=1, limit=4
  $region2: #{func_2_y_forward.1} parent=0 // loop_pre_header
    _
  $region3: #{func_2_y_forward.1} parent=0 // loop_header
    %s8 = sphi 0, %s12
    %p9 = scmp.ge.s32.totalorder %s8, 4
    %s18 = sphi 0, %s20
    %s21 = sphi 0, %s18
    %s22 = sphi 0, %s21
    %s38 = sphi 0, %s22
    %s44 = sphi 0, %s46
    %s47 = sphi 0, %s44
    %s48 = sphi 0, %s47
    %s64 = sphi 0, %s48
    %s70 = sphi 0, %s72
    %s73 = sphi 0, %s70
    %s74 = sphi 0, %s73
    %s90 = sphi 0, %s74
  $region4: #{func_2_y_forward.1} parent=0 // loop_header_branch
    %11 = sbr.rel (%p9) target = $region8
  $region5: #{func_2_y_forward.1} parent=0 // loop_body
    %s13 = ssub.s32 %s8, 1
    %s14 = ssub.s32 %s8, 2
    %s15 = sadd.s32 %s8, 1
    %s16 = ssub.s32 %s8, %s15
    %p17 = scmp.eq.s32.totalorder %s16, 0
    %s19 = sadd.s32 %s18, 1
    %s20 = scalar_select %p17, %s18, %s19
    %p23 = pneg %p17
    %p24 = scmp.eq.s32.totalorder %s8, 1
    %p25 = por %p23, %p24
    %p26 = scmp.ne.s32.totalorder %s18, %s21
    %p27 = scmp.eq.s32.totalorder %s8, 0
    %p28 = por %p26, %p27
    %p29 = scmp.ne.s32.totalorder %s18, %s21
    %p30 = scmp.eq.s32.totalorder %s13, 1
    %p31 = por %p29, %p30
    %p32 = scmp.ne.s32.totalorder %s21, %s22
    %p33 = scmp.eq.s32.totalorder %s13, 0
    %p34 = por %p32, %p33
    %p35 = scmp.ne.s32.totalorder %s21, %s22
    %p36 = scmp.eq.s32.totalorder %s14, 1
    %p37 = por %p35, %p36
    %p39 = scmp.ne.s32.totalorder %s22, %s38
    %p40 = scmp.eq.s32.totalorder %s14, 0
    %p41 = por %p39, %p40
    %s42 = ssub.s32 %s8, %s15
    %p43 = scmp.eq.s32.totalorder %s42, 0
    %s45 = sadd.s32 %s44, 1
    %s46 = scalar_select %p43, %s44, %s45
    %p49 = pneg %p43
    %p50 = scmp.eq.s32.totalorder %s8, 1
    %p51 = por %p49, %p50
    %p52 = scmp.ne.s32.totalorder %s44, %s47
    %p53 = scmp.eq.s32.totalorder %s8, 0
    %p54 = por %p52, %p53
    %p55 = scmp.ne.s32.totalorder %s44, %s47
    %p56 = scmp.eq.s32.totalorder %s13, 1
    %p57 = por %p55, %p56
    %p58 = scmp.ne.s32.totalorder %s47, %s48
    %p59 = scmp.eq.s32.totalorder %s13, 0
    %p60 = por %p58, %p59
    %p61 = scmp.ne.s32.totalorder %s47, %s48
    %p62 = scmp.eq.s32.totalorder %s14, 1
    %p63 = por %p61, %p62
    %p65 = scmp.ne.s32.totalorder %s48, %s64
    %p66 = scmp.eq.s32.totalorder %s14, 0
    %p67 = por %p65, %p66
    %s68 = ssub.s32 %s8, %s15
    %p69 = scmp.eq.s32.totalorder %s68, 0
    %s71 = sadd.s32 %s70, 1
    %s72 = scalar_select %p69, %s70, %s71
    %p75 = pneg %p69
    %p76 = scmp.eq.s32.totalorder %s8, 1
    %p77 = por %p75, %p76
    %p78 = scmp.ne.s32.totalorder %s70, %s73
    %p79 = scmp.eq.s32.totalorder %s8, 0
    %p80 = por %p78, %p79
    %p81 = scmp.ne.s32.totalorder %s70, %s73
    %p82 = scmp.eq.s32.totalorder %s13, 1
    %p83 = por %p81, %p82
    %p84 = scmp.ne.s32.totalorder %s73, %s74
    %p85 = scmp.eq.s32.totalorder %s13, 0
    %p86 = por %p84, %p85
    %p87 = scmp.ne.s32.totalorder %s73, %s74
    %p88 = scmp.eq.s32.totalorder %s14, 1
    %p89 = por %p87, %p88
    %p91 = scmp.ne.s32.totalorder %s74, %s90
    %p92 = scmp.eq.s32.totalorder %s14, 0
    %p93 = por %p91, %p92
    %p94 = scmp.le.s32.totalorder 1, %s8
    %p95 = scmp.lt.s32.totalorder %s8, 3
    %p96 = pnand %p94, %p95
    %p97 = pneg %p96
    // Predicated region
    $region9: #{func_2_y_forward.1} parent=5 // pred_check
      _
    $region10: #{func_2_y_forward.1} parent=5 // pred_check_branch
      %99 = sbr.rel (%p96) target = $region12
    $region11: #{func_2_y_forward.1} parent=5 // pred_region
      %s100 = ssub.s32 %s8, 1
    $region12: #{func_2_y_forward.1} parent=5 // pred_fallthru
      _
    %p101 = scmp.lt.s32.totalorder %s8, 2
    // Predicated region
    $region13: #{func_2_y_forward.1} parent=5 // pred_check
      %p102 = pneg %p101
    $region14: #{func_2_y_forward.1} parent=5 // pred_check_branch
      %104 = sbr.rel (%p102) target = $region16
    $region15: #{func_2_y_forward.1} parent=5 // pred_region
      // Predicated region
      $region17: #{func_2_y_forward.1} parent=15 // pred_check
        %p105 = pneg %p28
      $region18: #{func_2_y_forward.1} parent=15 // pred_check_branch
        %107 = sbr.rel (%p105) target = $region20
      $region19: #{func_2_y_forward.1} parent=15 // pred_region
        %s108 = smul.u32 2, %s8
        %p109 = scmp.lt.s32.totalorder %s108, 3
        %s110 = scalar_select %p109, %s108, 3
        %s111 = smul.addr %s110, 8
        %s112 = smul.addr %s111, 8
        %s113 = scalar_lea.vmem %s0, %s112
        %s114 = smul.u32 2, %s8
      $region20: #{func_2_y_forward.1} parent=15 // pred_fallthru
        _
      // Predicated region
      $region21: #{func_2_y_forward.1} parent=15 // pred_check
        %p115 = pneg %p54
      $region22: #{func_2_y_forward.1} parent=15 // pred_check_branch
        %117 = sbr.rel (%p115) target = $region24
      $region23: #{func_2_y_forward.1} parent=15 // pred_region
        %s118 = smul.u32 2, %s8
        %p119 = scmp.lt.s32.totalorder %s118, 3
        %s120 = scalar_select %p119, %s118, 3
        %s121 = smul.addr %s120, 8
        %s122 = smul.addr %s121, 8
        %s123 = scalar_lea.vmem %s1, %s122
        %s124 = smul.u32 2, %s8
      $region24: #{func_2_y_forward.1} parent=15 // pred_fallthru
        _
    $region16: #{func_2_y_forward.1} parent=5 // pred_fallthru
      _
    %p125 = scmp.le.s32.totalorder 1, %s8
    %p126 = scmp.lt.s32.totalorder %s8, 3
    %p127 = pnand %p125, %p126
    %p128 = pneg %p127
    // Predicated region
    $region25: #{func_2_y_forward.1} parent=5 // pred_check
      _
    $region26: #{func_2_y_forward.1} parent=5 // pred_check_branch
      %130 = sbr.rel (%p127) target = $region28
    $region27: #{func_2_y_forward.1} parent=5 // pred_region
      %s131 = ssub.s32 %s8, 1
      %s132 = smul.u32 2, %s13
      %p133 = scmp.lt.s32.totalorder %s132, 3
      %s134 = scalar_select %p133, %s132, 3
      %s135 = smul.addr %s134, 8
      %s136 = smul.addr %s135, 8
      %s137 = scalar_lea.vmem %s0, %s136
      %p138 = pneg %p34
      %p139 = pneg %p31
      %s140 = smul.u32 2, %s13
      %p141 = scmp.lt.s32.totalorder %s140, 3
      %s142 = scalar_select %p141, %s140, 3
      %s143 = smul.addr %s142, 8
      %s144 = smul.addr %s143, 8
      %s145 = scalar_lea.vmem %s1, %s144
      %p146 = pneg %p60
      %p147 = pneg %p57
      %p148 = pneg %p86
      %p149 = pneg %p83
      %s150 = smul.u32 2, %s13
      %p151 = scmp.lt.s32.totalorder %s150, 3
      %s152 = scalar_select %p151, %s150, 3
      %s153 = smul.addr %s152, 8
      %s154 = smul.addr %s153, 8
      %s155 = scalar_lea.vmem %s2, %s154
      %s156 = smul.u32 2, %s13
      %p157 = scmp.lt.s32.totalorder %s156, 3
      %s158 = scalar_select %p157, %s156, 3
      %s159 = smul.addr %s158, 8
      %s160 = smul.addr %s159, 8
      %s161 = scalar_lea.vmem %s0, %s160
      %s162 = smul.u32 2, %s13
      %s163 = smul.u32 2, %s13
      %p164 = scmp.lt.s32.totalorder %s163, 3
      %s165 = scalar_select %p164, %s163, 3
      %s166 = smul.addr %s165, 8
      %s167 = smul.addr %s166, 8
      %s168 = scalar_lea.vmem %s1, %s167
      %s169 = smul.u32 2, %s13
      %s170 = smul.u32 2, %s13
      %p171 = scmp.lt.s32.totalorder %s170, 3
      %s172 = scalar_select %p171, %s170, 3
      %s173 = smul.addr %s172, 8
      %s174 = smul.addr %s173, 8
      %s175 = scalar_lea.vmem %s2, %s174
      %s176 = smul.u32 2, %s13
      %v177 = vld [vmem:[%s161] sm:$0xff]
      %v178 = vld [vmem:[%s161 + $0x8] sm:$0xff]
      %v179 = vld [vmem:[%s161 + $0x10] sm:$0xff]
      %v180 = vld [vmem:[%s161 + $0x18] sm:$0xff]
      %v181 = vld [vmem:[%s161 + $0x20] sm:$0xff]
      %v182 = vld [vmem:[%s161 + $0x28] sm:$0xff]
      %v183 = vld [vmem:[%s161 + $0x30] sm:$0xff]
      %v184 = vld [vmem:[%s161 + $0x38] sm:$0xff]
      %v185 = vld [vmem:[%s161 + $0x40] sm:$0xff]
      %v186 = vld [vmem:[%s161 + $0x48] sm:$0xff]
      %v187 = vld [vmem:[%s161 + $0x50] sm:$0xff]
      %v188 = vld [vmem:[%s161 + $0x58] sm:$0xff]
      %v189 = vld [vmem:[%s161 + $0x60] sm:$0xff]
      %v190 = vld [vmem:[%s161 + $0x68] sm:$0xff]
      %v191 = vld [vmem:[%s161 + $0x70] sm:$0xff]
      %v192 = vld [vmem:[%s161 + $0x78] sm:$0xff]
      %v193 = vld [vmem:[%s168] sm:$0xff]
      %v194 = vld [vmem:[%s168 + $0x8] sm:$0xff]
      %v195 = vld [vmem:[%s168 + $0x10] sm:$0xff]
      %v196 = vld [vmem:[%s168 + $0x18] sm:$0xff]
      %v197 = vld [vmem:[%s168 + $0x20] sm:$0xff]
      %v198 = vld [vmem:[%s168 + $0x28] sm:$0xff]
      %v199 = vld [vmem:[%s168 + $0x30] sm:$0xff]
      %v200 = vld [vmem:[%s168 + $0x38] sm:$0xff]
      %v201 = vld [vmem:[%s168 + $0x40] sm:$0xff]
      %v202 = vld [vmem:[%s168 + $0x48] sm:$0xff]
      %v203 = vld [vmem:[%s168 + $0x50] sm:$0xff]
      %v204 = vld [vmem:[%s168 + $0x58] sm:$0xff]
      %v205 = vld [vmem:[%s168 + $0x60] sm:$0xff]
      %v206 = vld [vmem:[%s168 + $0x68] sm:$0xff]
      %v207 = vld [vmem:[%s168 + $0x70] sm:$0xff]
      %v208 = vld [vmem:[%s168 + $0x78] sm:$0xff]
      %v209 = vsub.f32 %v177, 2.0
      %v210 = vsub.f32 %v178, 2.0
      %v211 = vsub.f32 %v179, 2.0
      %v212 = vsub.f32 %v180, 2.0
      %v213 = vsub.f32 %v181, 2.0
      %v214 = vsub.f32 %v182, 2.0
      %v215 = vsub.f32 %v183, 2.0
      %v216 = vsub.f32 %v184, 2.0
      %v217 = vsub.f32 %v185, 2.0
      %v218 = vsub.f32 %v186, 2.0
      %v219 = vsub.f32 %v187, 2.0
      %v220 = vsub.f32 %v188, 2.0
      %v221 = vsub.f32 %v189, 2.0
      %v222 = vsub.f32 %v190, 2.0
      %v223 = vsub.f32 %v191, 2.0
      %v224 = vsub.f32 %v192, 2.0
      %v225 = vsub.f32 %v193, 3.0
      %v226 = vsub.f32 %v194, 3.0
      %v227 = vsub.f32 %v195, 3.0
      %v228 = vsub.f32 %v196, 3.0
      %v229 = vsub.f32 %v197, 3.0
      %v230 = vsub.f32 %v198, 3.0
      %v231 = vsub.f32 %v199, 3.0
      %v232 = vsub.f32 %v200, 3.0
      %v233 = vsub.f32 %v201, 3.0
      %v234 = vsub.f32 %v202, 3.0
      %v235 = vsub.f32 %v203, 3.0
      %v236 = vsub.f32 %v204, 3.0
      %v237 = vsub.f32 %v205, 3.0
      %v238 = vsub.f32 %v206, 3.0
      %v239 = vsub.f32 %v207, 3.0
      %v240 = vsub.f32 %v208, 3.0
      %v241 = vmul.f32 %v193, %v193
      %v242 = vmul.f32 %v194, %v194
      %v243 = vmul.f32 %v195, %v195
      %v244 = vmul.f32 %v196, %v196
      %v245 = vmul.f32 %v197, %v197
      %v246 = vmul.f32 %v198, %v198
      %v247 = vmul.f32 %v199, %v199
      %v248 = vmul.f32 %v200, %v200
      %v249 = vmul.f32 %v201, %v201
      %v250 = vmul.f32 %v202, %v202
      %v251 = vmul.f32 %v203, %v203
      %v252 = vmul.f32 %v204, %v204
      %v253 = vmul.f32 %v205, %v205
      %v254 = vmul.f32 %v206, %v206
      %v255 = vmul.f32 %v207, %v207
      %v256 = vmul.f32 %v208, %v208
      %v257 = vmul.f32 %v225, %v225
      %v258 = vmul.f32 %v226, %v226
      %v259 = vmul.f32 %v227, %v227
      %v260 = vmul.f32 %v228, %v228
      %v261 = vmul.f32 %v229, %v229
      %v262 = vmul.f32 %v230, %v230
      %v263 = vmul.f32 %v231, %v231
      %v264 = vmul.f32 %v232, %v232
      %v265 = vmul.f32 %v233, %v233
      %v266 = vmul.f32 %v234, %v234
      %v267 = vmul.f32 %v235, %v235
      %v268 = vmul.f32 %v236, %v236
      %v269 = vmul.f32 %v237, %v237
      %v270 = vmul.f32 %v238, %v238
      %v271 = vmul.f32 %v239, %v239
      %v272 = vmul.f32 %v240, %v240
      %v273 = vmul.f32 %v209, %v209
      %v274 = vmul.f32 %v210, %v210
      %v275 = vmul.f32 %v211, %v211
      %v276 = vmul.f32 %v212, %v212
      %v277 = vmul.f32 %v213, %v213
      %v278 = vmul.f32 %v214, %v214
      %v279 = vmul.f32 %v215, %v215
      %v280 = vmul.f32 %v216, %v216
      %v281 = vmul.f32 %v217, %v217
      %v282 = vmul.f32 %v218, %v218
      %v283 = vmul.f32 %v219, %v219
      %v284 = vmul.f32 %v220, %v220
      %v285 = vmul.f32 %v221, %v221
      %v286 = vmul.f32 %v222, %v222
      %v287 = vmul.f32 %v223, %v223
      %v288 = vmul.f32 %v224, %v224
      %v289 = vadd.f32 %v273, %v241
      %v290 = vadd.f32 %v274, %v242
      %v291 = vadd.f32 %v275, %v243
      %v292 = vadd.f32 %v276, %v244
      %v293 = vadd.f32 %v277, %v245
      %v294 = vadd.f32 %v278, %v246
      %v295 = vadd.f32 %v279, %v247
      %v296 = vadd.f32 %v280, %v248
      %v297 = vadd.f32 %v281, %v249
      %v298 = vadd.f32 %v282, %v250
      %v299 = vadd.f32 %v283, %v251
      %v300 = vadd.f32 %v284, %v252
      %v301 = vadd.f32 %v285, %v253
      %v302 = vadd.f32 %v286, %v254
      %v303 = vadd.f32 %v287, %v255
      %v304 = vadd.f32 %v288, %v256
      %v305 = vmul.f32 %v177, %v177
      %v306 = vmul.f32 %v178, %v178
      %v307 = vmul.f32 %v179, %v179
      %v308 = vmul.f32 %v180, %v180
      %v309 = vmul.f32 %v181, %v181
      %v310 = vmul.f32 %v182, %v182
      %v311 = vmul.f32 %v183, %v183
      %v312 = vmul.f32 %v184, %v184
      %v313 = vmul.f32 %v185, %v185
      %v314 = vmul.f32 %v186, %v186
      %v315 = vmul.f32 %v187, %v187
      %v316 = vmul.f32 %v188, %v188
      %v317 = vmul.f32 %v189, %v189
      %v318 = vmul.f32 %v190, %v190
      %v319 = vmul.f32 %v191, %v191
      %v320 = vmul.f32 %v192, %v192
      %v321 = vadd.f32 %v305, %v257
      %v322 = vadd.f32 %v306, %v258
      %v323 = vadd.f32 %v307, %v259
      %v324 = vadd.f32 %v308, %v260
      %v325 = vadd.f32 %v309, %v261
      %v326 = vadd.f32 %v310, %v262
      %v327 = vadd.f32 %v311, %v263
      %v328 = vadd.f32 %v312, %v264
      %v329 = vadd.f32 %v313, %v265
      %v330 = vadd.f32 %v314, %v266
      %v331 = vadd.f32 %v315, %v267
      %v332 = vadd.f32 %v316, %v268
      %v333 = vadd.f32 %v317, %v269
      %v334 = vadd.f32 %v318, %v270
      %v335 = vadd.f32 %v319, %v271
      %v336 = vadd.f32 %v320, %v272
      %v337 = vmul.f32 %v289, 0.63661975
      %v338 = vmul.f32 %v290, 0.63661975
      %v339 = vmul.f32 %v291, 0.63661975
      %v340 = vmul.f32 %v292, 0.63661975
      %v341 = vmul.f32 %v293, 0.63661975
      %v342 = vmul.f32 %v294, 0.63661975
      %v343 = vmul.f32 %v295, 0.63661975
      %v344 = vmul.f32 %v296, 0.63661975
      %v345 = vmul.f32 %v297, 0.63661975
      %v346 = vmul.f32 %v298, 0.63661975
      %v347 = vmul.f32 %v299, 0.63661975
      %v348 = vmul.f32 %v300, 0.63661975
      %v349 = vmul.f32 %v301, 0.63661975
      %v350 = vmul.f32 %v302, 0.63661975
      %v351 = vmul.f32 %v303, 0.63661975
      %v352 = vmul.f32 %v304, 0.63661975
      %v353 = vadd.f32 %v337, 0.5
      %v354 = vadd.f32 %v338, 0.5
      %v355 = vadd.f32 %v339, 0.5
      %v356 = vadd.f32 %v340, 0.5
      %v357 = vadd.f32 %v341, 0.5
      %v358 = vadd.f32 %v342, 0.5
      %v359 = vadd.f32 %v343, 0.5
      %v360 = vadd.f32 %v344, 0.5
      %v361 = vadd.f32 %v345, 0.5
      %v362 = vadd.f32 %v346, 0.5
      %v363 = vadd.f32 %v347, 0.5
      %v364 = vadd.f32 %v348, 0.5
      %v365 = vadd.f32 %v349, 0.5
      %v366 = vadd.f32 %v350, 0.5
      %v367 = vadd.f32 %v351, 0.5
      %v368 = vadd.f32 %v352, 0.5
      %v369 = vfloor.f32 %v353
      %v370 = vfloor.f32 %v354
      %v371 = vfloor.f32 %v355
      %v372 = vfloor.f32 %v356
      %v373 = vfloor.f32 %v357
      %v374 = vfloor.f32 %v358
      %v375 = vfloor.f32 %v359
      %v376 = vfloor.f32 %v360
      %v377 = vfloor.f32 %v361
      %v378 = vfloor.f32 %v362
      %v379 = vfloor.f32 %v363
      %v380 = vfloor.f32 %v364
      %v381 = vfloor.f32 %v365
      %v382 = vfloor.f32 %v366
      %v383 = vfloor.f32 %v367
      %v384 = vfloor.f32 %v368
      %v385 = vmul.f32 %v369, 1.5703125
      %v386 = vmul.f32 %v370, 1.5703125
      %v387 = vmul.f32 %v371, 1.5703125
      %v388 = vmul.f32 %v372, 1.5703125
      %v389 = vmul.f32 %v373, 1.5703125
      %v390 = vmul.f32 %v374, 1.5703125
      %v391 = vmul.f32 %v375, 1.5703125
      %v392 = vmul.f32 %v376, 1.5703125
      %v393 = vmul.f32 %v377, 1.5703125
      %v394 = vmul.f32 %v378, 1.5703125
      %v395 = vmul.f32 %v379, 1.5703125
      %v396 = vmul.f32 %v380, 1.5703125
      %v397 = vmul.f32 %v381, 1.5703125
      %v398 = vmul.f32 %v382, 1.5703125
      %v399 = vmul.f32 %v383, 1.5703125
      %v400 = vmul.f32 %v384, 1.5703125
      %v401 = vsub.f32 %v289, %v385
      %v402 = vsub.f32 %v290, %v386
      %v403 = vsub.f32 %v291, %v387
      %v404 = vsub.f32 %v292, %v388
      %v405 = vsub.f32 %v293, %v389
      %v406 = vsub.f32 %v294, %v390
      %v407 = vsub.f32 %v295, %v391
      %v408 = vsub.f32 %v296, %v392
      %v409 = vsub.f32 %v297, %v393
      %v410 = vsub.f32 %v298, %v394
      %v411 = vsub.f32 %v299, %v395
      %v412 = vsub.f32 %v300, %v396
      %v413 = vsub.f32 %v301, %v397
      %v414 = vsub.f32 %v302, %v398
      %v415 = vsub.f32 %v303, %v399
      %v416 = vsub.f32 %v304, %v400
      %v417 = vmul.f32 %v369, 0.00048351288
      %v418 = vmul.f32 %v370, 0.00048351288
      %v419 = vmul.f32 %v371, 0.00048351288
      %v420 = vmul.f32 %v372, 0.00048351288
      %v421 = vmul.f32 %v373, 0.00048351288
      %v422 = vmul.f32 %v374, 0.00048351288
      %v423 = vmul.f32 %v375, 0.00048351288
      %v424 = vmul.f32 %v376, 0.00048351288
      %v425 = vmul.f32 %v377, 0.00048351288
      %v426 = vmul.f32 %v378, 0.00048351288
      %v427 = vmul.f32 %v379, 0.00048351288
      %v428 = vmul.f32 %v380, 0.00048351288
      %v429 = vmul.f32 %v381, 0.00048351288
      %v430 = vmul.f32 %v382, 0.00048351288
      %v431 = vmul.f32 %v383, 0.00048351288
      %v432 = vmul.f32 %v384, 0.00048351288
      %v433 = vsub.f32 %v401, %v417
      %v434 = vsub.f32 %v402, %v418
      %v435 = vsub.f32 %v403, %v419
      %v436 = vsub.f32 %v404, %v420
      %v437 = vsub.f32 %v405, %v421
      %v438 = vsub.f32 %v406, %v422
      %v439 = vsub.f32 %v407, %v423
      %v440 = vsub.f32 %v408, %v424
      %v441 = vsub.f32 %v409, %v425
      %v442 = vsub.f32 %v410, %v426
      %v443 = vsub.f32 %v411, %v427
      %v444 = vsub.f32 %v412, %v428
      %v445 = vsub.f32 %v413, %v429
      %v446 = vsub.f32 %v414, %v430
      %v447 = vsub.f32 %v415, %v431
      %v448 = vsub.f32 %v416, %v432
      %v449 = vmul.f32 %v369, 3.138557e-07
      %v450 = vmul.f32 %v370, 3.138557e-07
      %v451 = vmul.f32 %v371, 3.138557e-07
      %v452 = vmul.f32 %v372, 3.138557e-07
      %v453 = vmul.f32 %v373, 3.138557e-07
      %v454 = vmul.f32 %v374, 3.138557e-07
      %v455 = vmul.f32 %v375, 3.138557e-07
      %v456 = vmul.f32 %v376, 3.138557e-07
      %v457 = vmul.f32 %v377, 3.138557e-07
      %v458 = vmul.f32 %v378, 3.138557e-07
      %v459 = vmul.f32 %v379, 3.138557e-07
      %v460 = vmul.f32 %v380, 3.138557e-07
      %v461 = vmul.f32 %v381, 3.138557e-07
      %v462 = vmul.f32 %v382, 3.138557e-07
      %v463 = vmul.f32 %v383, 3.138557e-07
      %v464 = vmul.f32 %v384, 3.138557e-07
      %v465 = vsub.f32 %v433, %v449
      %v466 = vsub.f32 %v434, %v450
      %v467 = vsub.f32 %v435, %v451
      %v468 = vsub.f32 %v436, %v452
      %v469 = vsub.f32 %v437, %v453
      %v470 = vsub.f32 %v438, %v454
      %v471 = vsub.f32 %v439, %v455
      %v472 = vsub.f32 %v440, %v456
      %v473 = vsub.f32 %v441, %v457
      %v474 = vsub.f32 %v442, %v458
      %v475 = vsub.f32 %v443, %v459
      %v476 = vsub.f32 %v444, %v460
      %v477 = vsub.f32 %v445, %v461
      %v478 = vsub.f32 %v446, %v462
      %v479 = vsub.f32 %v447, %v463
      %v480 = vsub.f32 %v448, %v464
      %v481 = vmul.f32 %v465, %v465
      %v482 = vmul.f32 %v466, %v466
      %v483 = vmul.f32 %v467, %v467
      %v484 = vmul.f32 %v468, %v468
      %v485 = vmul.f32 %v469, %v469
      %v486 = vmul.f32 %v470, %v470
      %v487 = vmul.f32 %v471, %v471
      %v488 = vmul.f32 %v472, %v472
      %v489 = vmul.f32 %v473, %v473
      %v490 = vmul.f32 %v474, %v474
      %v491 = vmul.f32 %v475, %v475
      %v492 = vmul.f32 %v476, %v476
      %v493 = vmul.f32 %v477, %v477
      %v494 = vmul.f32 %v478, %v478
      %v495 = vmul.f32 %v479, %v479
      %v496 = vmul.f32 %v480, %v480
      %v497 = vmul.f32 %v481, -0.00019515296
      %v498 = vmul.f32 %v482, -0.00019515296
      %v499 = vmul.f32 %v483, -0.00019515296
      %v500 = vmul.f32 %v484, -0.00019515296
      %v501 = vmul.f32 %v485, -0.00019515296
      %v502 = vmul.f32 %v486, -0.00019515296
      %v503 = vmul.f32 %v487, -0.00019515296
      %v504 = vmul.f32 %v488, -0.00019515296
      %v505 = vmul.f32 %v489, -0.00019515296
      %v506 = vmul.f32 %v490, -0.00019515296
      %v507 = vmul.f32 %v491, -0.00019515296
      %v508 = vmul.f32 %v492, -0.00019515296
      %v509 = vmul.f32 %v493, -0.00019515296
      %v510 = vmul.f32 %v494, -0.00019515296
      %v511 = vmul.f32 %v495, -0.00019515296
      %v512 = vmul.f32 %v496, -0.00019515296
      %v513 = vadd.f32 %v497, 0.008332161
      %v514 = vadd.f32 %v498, 0.008332161
      %v515 = vadd.f32 %v499, 0.008332161
      %v516 = vadd.f32 %v500, 0.008332161
      %v517 = vadd.f32 %v501, 0.008332161
      %v518 = vadd.f32 %v502, 0.008332161
      %v519 = vadd.f32 %v503, 0.008332161
      %v520 = vadd.f32 %v504, 0.008332161
      %v521 = vadd.f32 %v505, 0.008332161
      %v522 = vadd.f32 %v506, 0.008332161
      %v523 = vadd.f32 %v507, 0.008332161
      %v524 = vadd.f32 %v508, 0.008332161
      %v525 = vadd.f32 %v509, 0.008332161
      %v526 = vadd.f32 %v510, 0.008332161
      %v527 = vadd.f32 %v511, 0.008332161
      %v528 = vadd.f32 %v512, 0.008332161
      %v529 = vmul.f32 %v513, %v481
      %v530 = vmul.f32 %v514, %v482
      %v531 = vmul.f32 %v515, %v483
      %v532 = vmul.f32 %v516, %v484
      %v533 = vmul.f32 %v517, %v485
      %v534 = vmul.f32 %v518, %v486
      %v535 = vmul.f32 %v519, %v487
      %v536 = vmul.f32 %v520, %v488
      %v537 = vmul.f32 %v521, %v489
      %v538 = vmul.f32 %v522, %v490
      %v539 = vmul.f32 %v523, %v491
      %v540 = vmul.f32 %v524, %v492
      %v541 = vmul.f32 %v525, %v493
      %v542 = vmul.f32 %v526, %v494
      %v543 = vmul.f32 %v527, %v495
      %v544 = vmul.f32 %v528, %v496
      %v545 = vsub.f32 %v529, 0.16666655
      %v546 = vsub.f32 %v530, 0.16666655
      %v547 = vsub.f32 %v531, 0.16666655
      %v548 = vsub.f32 %v532, 0.16666655
      %v549 = vsub.f32 %v533, 0.16666655
      %v550 = vsub.f32 %v534, 0.16666655
      %v551 = vsub.f32 %v535, 0.16666655
      %v552 = vsub.f32 %v536, 0.16666655
      %v553 = vsub.f32 %v537, 0.16666655
      %v554 = vsub.f32 %v538, 0.16666655
      %v555 = vsub.f32 %v539, 0.16666655
      %v556 = vsub.f32 %v540, 0.16666655
      %v557 = vsub.f32 %v541, 0.16666655
      %v558 = vsub.f32 %v542, 0.16666655
      %v559 = vsub.f32 %v543, 0.16666655
      %v560 = vsub.f32 %v544, 0.16666655
      %v561 = vmul.f32 %v545, %v481
      %v562 = vmul.f32 %v546, %v482
      %v563 = vmul.f32 %v547, %v483
      %v564 = vmul.f32 %v548, %v484
      %v565 = vmul.f32 %v549, %v485
      %v566 = vmul.f32 %v550, %v486
      %v567 = vmul.f32 %v551, %v487
      %v568 = vmul.f32 %v552, %v488
      %v569 = vmul.f32 %v553, %v489
      %v570 = vmul.f32 %v554, %v490
      %v571 = vmul.f32 %v555, %v491
      %v572 = vmul.f32 %v556, %v492
      %v573 = vmul.f32 %v557, %v493
      %v574 = vmul.f32 %v558, %v494
      %v575 = vmul.f32 %v559, %v495
      %v576 = vmul.f32 %v560, %v496
      %v577 = vmul.f32 %v561, %v465
      %v578 = vmul.f32 %v562, %v466
      %v579 = vmul.f32 %v563, %v467
      %v580 = vmul.f32 %v564, %v468
      %v581 = vmul.f32 %v565, %v469
      %v582 = vmul.f32 %v566, %v470
      %v583 = vmul.f32 %v567, %v471
      %v584 = vmul.f32 %v568, %v472
      %v585 = vmul.f32 %v569, %v473
      %v586 = vmul.f32 %v570, %v474
      %v587 = vmul.f32 %v571, %v475
      %v588 = vmul.f32 %v572, %v476
      %v589 = vmul.f32 %v573, %v477
      %v590 = vmul.f32 %v574, %v478
      %v591 = vmul.f32 %v575, %v479
      %v592 = vmul.f32 %v576, %v480
      %v593 = vadd.f32 %v577, %v465
      %v594 = vadd.f32 %v578, %v466
      %v595 = vadd.f32 %v579, %v467
      %v596 = vadd.f32 %v580, %v468
      %v597 = vadd.f32 %v581, %v469
      %v598 = vadd.f32 %v582, %v470
      %v599 = vadd.f32 %v583, %v471
      %v600 = vadd.f32 %v584, %v472
      %v601 = vadd.f32 %v585, %v473
      %v602 = vadd.f32 %v586, %v474
      %v603 = vadd.f32 %v587, %v475
      %v604 = vadd.f32 %v588, %v476
      %v605 = vadd.f32 %v589, %v477
      %v606 = vadd.f32 %v590, %v478
      %v607 = vadd.f32 %v591, %v479
      %v608 = vadd.f32 %v592, %v480
      %v609 = vmul.f32 %v481, 2.4433157e-05
      %v610 = vmul.f32 %v482, 2.4433157e-05
      %v611 = vmul.f32 %v483, 2.4433157e-05
      %v612 = vmul.f32 %v484, 2.4433157e-05
      %v613 = vmul.f32 %v485, 2.4433157e-05
      %v614 = vmul.f32 %v486, 2.4433157e-05
      %v615 = vmul.f32 %v487, 2.4433157e-05
      %v616 = vmul.f32 %v488, 2.4433157e-05
      %v617 = vmul.f32 %v489, 2.4433157e-05
      %v618 = vmul.f32 %v490, 2.4433157e-05
      %v619 = vmul.f32 %v491, 2.4433157e-05
      %v620 = vmul.f32 %v492, 2.4433157e-05
      %v621 = vmul.f32 %v493, 2.4433157e-05
      %v622 = vmul.f32 %v494, 2.4433157e-05
      %v623 = vmul.f32 %v495, 2.4433157e-05
      %v624 = vmul.f32 %v496, 2.4433157e-05
      %v625 = vsub.f32 %v609, 0.0013887316
      %v626 = vsub.f32 %v610, 0.0013887316
      %v627 = vsub.f32 %v611, 0.0013887316
      %v628 = vsub.f32 %v612, 0.0013887316
      %v629 = vsub.f32 %v613, 0.0013887316
      %v630 = vsub.f32 %v614, 0.0013887316
      %v631 = vsub.f32 %v615, 0.0013887316
      %v632 = vsub.f32 %v616, 0.0013887316
      %v633 = vsub.f32 %v617, 0.0013887316
      %v634 = vsub.f32 %v618, 0.0013887316
      %v635 = vsub.f32 %v619, 0.0013887316
      %v636 = vsub.f32 %v620, 0.0013887316
      %v637 = vsub.f32 %v621, 0.0013887316
      %v638 = vsub.f32 %v622, 0.0013887316
      %v639 = vsub.f32 %v623, 0.0013887316
      %v640 = vsub.f32 %v624, 0.0013887316
      %v641 = vmul.f32 %v625, %v481
      %v642 = vmul.f32 %v626, %v482
      %v643 = vmul.f32 %v627, %v483
      %v644 = vmul.f32 %v628, %v484
      %v645 = vmul.f32 %v629, %v485
      %v646 = vmul.f32 %v630, %v486
      %v647 = vmul.f32 %v631, %v487
      %v648 = vmul.f32 %v632, %v488
      %v649 = vmul.f32 %v633, %v489
      %v650 = vmul.f32 %v634, %v490
      %v651 = vmul.f32 %v635, %v491
      %v652 = vmul.f32 %v636, %v492
      %v653 = vmul.f32 %v637, %v493
      %v654 = vmul.f32 %v638, %v494
      %v655 = vmul.f32 %v639, %v495
      %v656 = vmul.f32 %v640, %v496
      %v657 = vadd.f32 %v641, 0.041666646
      %v658 = vadd.f32 %v642, 0.041666646
      %v659 = vadd.f32 %v643, 0.041666646
      %v660 = vadd.f32 %v644, 0.041666646
      %v661 = vadd.f32 %v645, 0.041666646
      %v662 = vadd.f32 %v646, 0.041666646
      %v663 = vadd.f32 %v647, 0.041666646
      %v664 = vadd.f32 %v648, 0.041666646
      %v665 = vadd.f32 %v649, 0.041666646
      %v666 = vadd.f32 %v650, 0.041666646
      %v667 = vadd.f32 %v651, 0.041666646
      %v668 = vadd.f32 %v652, 0.041666646
      %v669 = vadd.f32 %v653, 0.041666646
      %v670 = vadd.f32 %v654, 0.041666646
      %v671 = vadd.f32 %v655, 0.041666646
      %v672 = vadd.f32 %v656, 0.041666646
      %v673 = vmul.f32 %v657, %v481
      %v674 = vmul.f32 %v658, %v482
      %v675 = vmul.f32 %v659, %v483
      %v676 = vmul.f32 %v660, %v484
      %v677 = vmul.f32 %v661, %v485
      %v678 = vmul.f32 %v662, %v486
      %v679 = vmul.f32 %v663, %v487
      %v680 = vmul.f32 %v664, %v488
      %v681 = vmul.f32 %v665, %v489
      %v682 = vmul.f32 %v666, %v490
      %v683 = vmul.f32 %v667, %v491
      %v684 = vmul.f32 %v668, %v492
      %v685 = vmul.f32 %v669, %v493
      %v686 = vmul.f32 %v670, %v494
      %v687 = vmul.f32 %v671, %v495
      %v688 = vmul.f32 %v672, %v496
      %v689 = vmul.f32 %v673, %v481
      %v690 = vmul.f32 %v674, %v482
      %v691 = vmul.f32 %v675, %v483
      %v692 = vmul.f32 %v676, %v484
      %v693 = vmul.f32 %v677, %v485
      %v694 = vmul.f32 %v678, %v486
      %v695 = vmul.f32 %v679, %v487
      %v696 = vmul.f32 %v680, %v488
      %v697 = vmul.f32 %v681, %v489
      %v698 = vmul.f32 %v682, %v490
      %v699 = vmul.f32 %v683, %v491
      %v700 = vmul.f32 %v684, %v492
      %v701 = vmul.f32 %v685, %v493
      %v702 = vmul.f32 %v686, %v494
      %v703 = vmul.f32 %v687, %v495
      %v704 = vmul.f32 %v688, %v496
      %v705 = vmul.f32 %v481, 0.5
      %v706 = vmul.f32 %v482, 0.5
      %v707 = vmul.f32 %v483, 0.5
      %v708 = vmul.f32 %v484, 0.5
      %v709 = vmul.f32 %v485, 0.5
      %v710 = vmul.f32 %v486, 0.5
      %v711 = vmul.f32 %v487, 0.5
      %v712 = vmul.f32 %v488, 0.5
      %v713 = vmul.f32 %v489, 0.5
      %v714 = vmul.f32 %v490, 0.5
      %v715 = vmul.f32 %v491, 0.5
      %v716 = vmul.f32 %v492, 0.5
      %v717 = vmul.f32 %v493, 0.5
      %v718 = vmul.f32 %v494, 0.5
      %v719 = vmul.f32 %v495, 0.5
      %v720 = vmul.f32 %v496, 0.5
      %v721 = vsub.f32 %v689, %v705
      %v722 = vsub.f32 %v690, %v706
      %v723 = vsub.f32 %v691, %v707
      %v724 = vsub.f32 %v692, %v708
      %v725 = vsub.f32 %v693, %v709
      %v726 = vsub.f32 %v694, %v710
      %v727 = vsub.f32 %v695, %v711
      %v728 = vsub.f32 %v696, %v712
      %v729 = vsub.f32 %v697, %v713
      %v730 = vsub.f32 %v698, %v714
      %v731 = vsub.f32 %v699, %v715
      %v732 = vsub.f32 %v700, %v716
      %v733 = vsub.f32 %v701, %v717
      %v734 = vsub.f32 %v702, %v718
      %v735 = vsub.f32 %v703, %v719
      %v736 = vsub.f32 %v704, %v720
      %v737 = vadd.f32 %v721, 1.0
      %v738 = vadd.f32 %v722, 1.0
      %v739 = vadd.f32 %v723, 1.0
      %v740 = vadd.f32 %v724, 1.0
      %v741 = vadd.f32 %v725, 1.0
      %v742 = vadd.f32 %v726, 1.0
      %v743 = vadd.f32 %v727, 1.0
      %v744 = vadd.f32 %v728, 1.0
      %v745 = vadd.f32 %v729, 1.0
      %v746 = vadd.f32 %v730, 1.0
      %v747 = vadd.f32 %v731, 1.0
      %v748 = vadd.f32 %v732, 1.0
      %v749 = vadd.f32 %v733, 1.0
      %v750 = vadd.f32 %v734, 1.0
      %v751 = vadd.f32 %v735, 1.0
      %v752 = vadd.f32 %v736, 1.0
      %v753 = vcvt.f32.s32.to.zero.pseudo %v369
      %v754 = vcvt.f32.s32.to.zero.pseudo %v370
      %v755 = vcvt.f32.s32.to.zero.pseudo %v371
      %v756 = vcvt.f32.s32.to.zero.pseudo %v372
      %v757 = vcvt.f32.s32.to.zero.pseudo %v373
      %v758 = vcvt.f32.s32.to.zero.pseudo %v374
      %v759 = vcvt.f32.s32.to.zero.pseudo %v375
      %v760 = vcvt.f32.s32.to.zero.pseudo %v376
      %v761 = vcvt.f32.s32.to.zero.pseudo %v377
      %v762 = vcvt.f32.s32.to.zero.pseudo %v378
      %v763 = vcvt.f32.s32.to.zero.pseudo %v379
      %v764 = vcvt.f32.s32.to.zero.pseudo %v380
      %v765 = vcvt.f32.s32.to.zero.pseudo %v381
      %v766 = vcvt.f32.s32.to.zero.pseudo %v382
      %v767 = vcvt.f32.s32.to.zero.pseudo %v383
      %v768 = vcvt.f32.s32.to.zero.pseudo %v384
      %v769 = vand.u32 %v753, 1
      %v770 = vand.u32 %v754, 1
      %v771 = vand.u32 %v755, 1
      %v772 = vand.u32 %v756, 1
      %v773 = vand.u32 %v757, 1
      %v774 = vand.u32 %v758, 1
      %v775 = vand.u32 %v759, 1
      %v776 = vand.u32 %v760, 1
      %v777 = vand.u32 %v761, 1
      %v778 = vand.u32 %v762, 1
      %v779 = vand.u32 %v763, 1
      %v780 = vand.u32 %v764, 1
      %v781 = vand.u32 %v765, 1
      %v782 = vand.u32 %v766, 1
      %v783 = vand.u32 %v767, 1
      %v784 = vand.u32 %v768, 1
      %vm785 = vcmp.eq.s32.totalorder %v769, 1
      %vm786 = vcmp.eq.s32.totalorder %v770, 1
      %vm787 = vcmp.eq.s32.totalorder %v771, 1
      %vm788 = vcmp.eq.s32.totalorder %v772, 1
      %vm789 = vcmp.eq.s32.totalorder %v773, 1
      %vm790 = vcmp.eq.s32.totalorder %v774, 1
      %vm791 = vcmp.eq.s32.totalorder %v775, 1
      %vm792 = vcmp.eq.s32.totalorder %v776, 1
      %vm793 = vcmp.eq.s32.totalorder %v777, 1
      %vm794 = vcmp.eq.s32.totalorder %v778, 1
      %vm795 = vcmp.eq.s32.totalorder %v779, 1
      %vm796 = vcmp.eq.s32.totalorder %v780, 1
      %vm797 = vcmp.eq.s32.totalorder %v781, 1
      %vm798 = vcmp.eq.s32.totalorder %v782, 1
      %vm799 = vcmp.eq.s32.totalorder %v783, 1
      %vm800 = vcmp.eq.s32.totalorder %v784, 1
      %v801 = vsel %vm785, %v737, %v593
      %v802 = vsel %vm786, %v738, %v594
      %v803 = vsel %vm787, %v739, %v595
      %v804 = vsel %vm788, %v740, %v596
      %v805 = vsel %vm789, %v741, %v597
      %v806 = vsel %vm790, %v742, %v598
      %v807 = vsel %vm791, %v743, %v599
      %v808 = vsel %vm792, %v744, %v600
      %v809 = vsel %vm793, %v745, %v601
      %v810 = vsel %vm794, %v746, %v602
      %v811 = vsel %vm795, %v747, %v603
      %v812 = vsel %vm796, %v748, %v604
      %v813 = vsel %vm797, %v749, %v605
      %v814 = vsel %vm798, %v750, %v606
      %v815 = vsel %vm799, %v751, %v607
      %v816 = vsel %vm800, %v752, %v608
      %v817 = vsel %vm785, %v593, %v737
      %v818 = vsel %vm786, %v594, %v738
      %v819 = vsel %vm787, %v595, %v739
      %v820 = vsel %vm788, %v596, %v740
      %v821 = vsel %vm789, %v597, %v741
      %v822 = vsel %vm790, %v598, %v742
      %v823 = vsel %vm791, %v599, %v743
      %v824 = vsel %vm792, %v600, %v744
      %v825 = vsel %vm793, %v601, %v745
      %v826 = vsel %vm794, %v602, %v746
      %v827 = vsel %vm795, %v603, %v747
      %v828 = vsel %vm796, %v604, %v748
      %v829 = vsel %vm797, %v605, %v749
      %v830 = vsel %vm798, %v606, %v750
      %v831 = vsel %vm799, %v607, %v751
      %v832 = vsel %vm800, %v608, %v752
      %v833 = vand.u32 %v753, 2
      %v834 = vand.u32 %v754, 2
      %v835 = vand.u32 %v755, 2
      %v836 = vand.u32 %v756, 2
      %v837 = vand.u32 %v757, 2
      %v838 = vand.u32 %v758, 2
      %v839 = vand.u32 %v759, 2
      %v840 = vand.u32 %v760, 2
      %v841 = vand.u32 %v761, 2
      %v842 = vand.u32 %v762, 2
      %v843 = vand.u32 %v763, 2
      %v844 = vand.u32 %v764, 2
      %v845 = vand.u32 %v765, 2
      %v846 = vand.u32 %v766, 2
      %v847 = vand.u32 %v767, 2
      %v848 = vand.u32 %v768, 2
      %vm849 = vcmp.eq.s32.totalorder %v833, 2
      %vm850 = vcmp.eq.s32.totalorder %v834, 2
      %vm851 = vcmp.eq.s32.totalorder %v835, 2
      %vm852 = vcmp.eq.s32.totalorder %v836, 2
      %vm853 = vcmp.eq.s32.totalorder %v837, 2
      %vm854 = vcmp.eq.s32.totalorder %v838, 2
      %vm855 = vcmp.eq.s32.totalorder %v839, 2
      %vm856 = vcmp.eq.s32.totalorder %v840, 2
      %vm857 = vcmp.eq.s32.totalorder %v841, 2
      %vm858 = vcmp.eq.s32.totalorder %v842, 2
      %vm859 = vcmp.eq.s32.totalorder %v843, 2
      %vm860 = vcmp.eq.s32.totalorder %v844, 2
      %vm861 = vcmp.eq.s32.totalorder %v845, 2
      %vm862 = vcmp.eq.s32.totalorder %v846, 2
      %vm863 = vcmp.eq.s32.totalorder %v847, 2
      %vm864 = vcmp.eq.s32.totalorder %v848, 2
      %v865 = vadd.s32 %v753, 1
      %v866 = vadd.s32 %v754, 1
      %v867 = vadd.s32 %v755, 1
      %v868 = vadd.s32 %v756, 1
      %v869 = vadd.s32 %v757, 1
      %v870 = vadd.s32 %v758, 1
      %v871 = vadd.s32 %v759, 1
      %v872 = vadd.s32 %v760, 1
      %v873 = vadd.s32 %v761, 1
      %v874 = vadd.s32 %v762, 1
      %v875 = vadd.s32 %v763, 1
      %v876 = vadd.s32 %v764, 1
      %v877 = vadd.s32 %v765, 1
      %v878 = vadd.s32 %v766, 1
      %v879 = vadd.s32 %v767, 1
      %v880 = vadd.s32 %v768, 1
      %v881 = vand.u32 %v865, 2
      %v882 = vand.u32 %v866, 2
      %v883 = vand.u32 %v867, 2
      %v884 = vand.u32 %v868, 2
      %v885 = vand.u32 %v869, 2
      %v886 = vand.u32 %v870, 2
      %v887 = vand.u32 %v871, 2
      %v888 = vand.u32 %v872, 2
      %v889 = vand.u32 %v873, 2
      %v890 = vand.u32 %v874, 2
      %v891 = vand.u32 %v875, 2
      %v892 = vand.u32 %v876, 2
      %v893 = vand.u32 %v877, 2
      %v894 = vand.u32 %v878, 2
      %v895 = vand.u32 %v879, 2
      %v896 = vand.u32 %v880, 2
      %vm897 = vcmp.eq.s32.totalorder %v881, 2
      %vm898 = vcmp.eq.s32.totalorder %v882, 2
      %vm899 = vcmp.eq.s32.totalorder %v883, 2
      %vm900 = vcmp.eq.s32.totalorder %v884, 2
      %vm901 = vcmp.eq.s32.totalorder %v885, 2
      %vm902 = vcmp.eq.s32.totalorder %v886, 2
      %vm903 = vcmp.eq.s32.totalorder %v887, 2
      %vm904 = vcmp.eq.s32.totalorder %v888, 2
      %vm905 = vcmp.eq.s32.totalorder %v889, 2
      %vm906 = vcmp.eq.s32.totalorder %v890, 2
      %vm907 = vcmp.eq.s32.totalorder %v891, 2
      %vm908 = vcmp.eq.s32.totalorder %v892, 2
      %vm909 = vcmp.eq.s32.totalorder %v893, 2
      %vm910 = vcmp.eq.s32.totalorder %v894, 2
      %vm911 = vcmp.eq.s32.totalorder %v895, 2
      %vm912 = vcmp.eq.s32.totalorder %v896, 2
      %v913 = vsub.f32 0.0, %v801
      %v914 = vsub.f32 0.0, %v802
      %v915 = vsub.f32 0.0, %v803
      %v916 = vsub.f32 0.0, %v804
      %v917 = vsub.f32 0.0, %v805
      %v918 = vsub.f32 0.0, %v806
      %v919 = vsub.f32 0.0, %v807
      %v920 = vsub.f32 0.0, %v808
      %v921 = vsub.f32 0.0, %v809
      %v922 = vsub.f32 0.0, %v810
      %v923 = vsub.f32 0.0, %v811
      %v924 = vsub.f32 0.0, %v812
      %v925 = vsub.f32 0.0, %v813
      %v926 = vsub.f32 0.0, %v814
      %v927 = vsub.f32 0.0, %v815
      %v928 = vsub.f32 0.0, %v816
      %v929 = vsel %vm849, %v913, %v801
      %v930 = vsel %vm850, %v914, %v802
      %v931 = vsel %vm851, %v915, %v803
      %v932 = vsel %vm852, %v916, %v804
      %v933 = vsel %vm853, %v917, %v805
      %v934 = vsel %vm854, %v918, %v806
      %v935 = vsel %vm855, %v919, %v807
      %v936 = vsel %vm856, %v920, %v808
      %v937 = vsel %vm857, %v921, %v809
      %v938 = vsel %vm858, %v922, %v810
      %v939 = vsel %vm859, %v923, %v811
      %v940 = vsel %vm860, %v924, %v812
      %v941 = vsel %vm861, %v925, %v813
      %v942 = vsel %vm862, %v926, %v814
      %v943 = vsel %vm863, %v927, %v815
      %v944 = vsel %vm864, %v928, %v816
      %v945 = vsub.f32 0.0, %v817
      %v946 = vsub.f32 0.0, %v818
      %v947 = vsub.f32 0.0, %v819
      %v948 = vsub.f32 0.0, %v820
      %v949 = vsub.f32 0.0, %v821
      %v950 = vsub.f32 0.0, %v822
      %v951 = vsub.f32 0.0, %v823
      %v952 = vsub.f32 0.0, %v824
      %v953 = vsub.f32 0.0, %v825
      %v954 = vsub.f32 0.0, %v826
      %v955 = vsub.f32 0.0, %v827
      %v956 = vsub.f32 0.0, %v828
      %v957 = vsub.f32 0.0, %v829
      %v958 = vsub.f32 0.0, %v830
      %v959 = vsub.f32 0.0, %v831
      %v960 = vsub.f32 0.0, %v832
      %v961 = vsel %vm897, %v945, %v817
      %v962 = vsel %vm898, %v946, %v818
      %v963 = vsel %vm899, %v947, %v819
      %v964 = vsel %vm900, %v948, %v820
      %v965 = vsel %vm901, %v949, %v821
      %v966 = vsel %vm902, %v950, %v822
      %v967 = vsel %vm903, %v951, %v823
      %v968 = vsel %vm904, %v952, %v824
      %v969 = vsel %vm905, %v953, %v825
      %v970 = vsel %vm906, %v954, %v826
      %v971 = vsel %vm907, %v955, %v827
      %v972 = vsel %vm908, %v956, %v828
      %v973 = vsel %vm909, %v957, %v829
      %v974 = vsel %vm910, %v958, %v830
      %v975 = vsel %vm911, %v959, %v831
      %v976 = vsel %vm912, %v960, %v832
      %v977 = vmul.f32 %v321, 0.63661975
      %v978 = vmul.f32 %v322, 0.63661975
      %v979 = vmul.f32 %v323, 0.63661975
      %v980 = vmul.f32 %v324, 0.63661975
      %v981 = vmul.f32 %v325, 0.63661975
      %v982 = vmul.f32 %v326, 0.63661975
      %v983 = vmul.f32 %v327, 0.63661975
      %v984 = vmul.f32 %v328, 0.63661975
      %v985 = vmul.f32 %v329, 0.63661975
      %v986 = vmul.f32 %v330, 0.63661975
      %v987 = vmul.f32 %v331, 0.63661975
      %v988 = vmul.f32 %v332, 0.63661975
      %v989 = vmul.f32 %v333, 0.63661975
      %v990 = vmul.f32 %v334, 0.63661975
      %v991 = vmul.f32 %v335, 0.63661975
      %v992 = vmul.f32 %v336, 0.63661975
      %v993 = vadd.f32 %v977, 0.5
      %v994 = vadd.f32 %v978, 0.5
      %v995 = vadd.f32 %v979, 0.5
      %v996 = vadd.f32 %v980, 0.5
      %v997 = vadd.f32 %v981, 0.5
      %v998 = vadd.f32 %v982, 0.5
      %v999 = vadd.f32 %v983, 0.5
      %v1000 = vadd.f32 %v984, 0.5
      %v1001 = vadd.f32 %v985, 0.5
      %v1002 = vadd.f32 %v986, 0.5
      %v1003 = vadd.f32 %v987, 0.5
      %v1004 = vadd.f32 %v988, 0.5
      %v1005 = vadd.f32 %v989, 0.5
      %v1006 = vadd.f32 %v990, 0.5
      %v1007 = vadd.f32 %v991, 0.5
      %v1008 = vadd.f32 %v992, 0.5
      %v1009 = vfloor.f32 %v993
      %v1010 = vfloor.f32 %v994
      %v1011 = vfloor.f32 %v995
      %v1012 = vfloor.f32 %v996
      %v1013 = vfloor.f32 %v997
      %v1014 = vfloor.f32 %v998
      %v1015 = vfloor.f32 %v999
      %v1016 = vfloor.f32 %v1000
      %v1017 = vfloor.f32 %v1001
      %v1018 = vfloor.f32 %v1002
      %v1019 = vfloor.f32 %v1003
      %v1020 = vfloor.f32 %v1004
      %v1021 = vfloor.f32 %v1005
      %v1022 = vfloor.f32 %v1006
      %v1023 = vfloor.f32 %v1007
      %v1024 = vfloor.f32 %v1008
      %v1025 = vmul.f32 %v1009, 1.5703125
      %v1026 = vmul.f32 %v1010, 1.5703125
      %v1027 = vmul.f32 %v1011, 1.5703125
      %v1028 = vmul.f32 %v1012, 1.5703125
      %v1029 = vmul.f32 %v1013, 1.5703125
      %v1030 = vmul.f32 %v1014, 1.5703125
      %v1031 = vmul.f32 %v1015, 1.5703125
      %v1032 = vmul.f32 %v1016, 1.5703125
      %v1033 = vmul.f32 %v1017, 1.5703125
      %v1034 = vmul.f32 %v1018, 1.5703125
      %v1035 = vmul.f32 %v1019, 1.5703125
      %v1036 = vmul.f32 %v1020, 1.5703125
      %v1037 = vmul.f32 %v1021, 1.5703125
      %v1038 = vmul.f32 %v1022, 1.5703125
      %v1039 = vmul.f32 %v1023, 1.5703125
      %v1040 = vmul.f32 %v1024, 1.5703125
      %v1041 = vsub.f32 %v321, %v1025
      %v1042 = vsub.f32 %v322, %v1026
      %v1043 = vsub.f32 %v323, %v1027
      %v1044 = vsub.f32 %v324, %v1028
      %v1045 = vsub.f32 %v325, %v1029
      %v1046 = vsub.f32 %v326, %v1030
      %v1047 = vsub.f32 %v327, %v1031
      %v1048 = vsub.f32 %v328, %v1032
      %v1049 = vsub.f32 %v329, %v1033
      %v1050 = vsub.f32 %v330, %v1034
      %v1051 = vsub.f32 %v331, %v1035
      %v1052 = vsub.f32 %v332, %v1036
      %v1053 = vsub.f32 %v333, %v1037
      %v1054 = vsub.f32 %v334, %v1038
      %v1055 = vsub.f32 %v335, %v1039
      %v1056 = vsub.f32 %v336, %v1040
      %v1057 = vmul.f32 %v1009, 0.00048351288
      %v1058 = vmul.f32 %v1010, 0.00048351288
      %v1059 = vmul.f32 %v1011, 0.00048351288
      %v1060 = vmul.f32 %v1012, 0.00048351288
      %v1061 = vmul.f32 %v1013, 0.00048351288
      %v1062 = vmul.f32 %v1014, 0.00048351288
      %v1063 = vmul.f32 %v1015, 0.00048351288
      %v1064 = vmul.f32 %v1016, 0.00048351288
      %v1065 = vmul.f32 %v1017, 0.00048351288
      %v1066 = vmul.f32 %v1018, 0.00048351288
      %v1067 = vmul.f32 %v1019, 0.00048351288
      %v1068 = vmul.f32 %v1020, 0.00048351288
      %v1069 = vmul.f32 %v1021, 0.00048351288
      %v1070 = vmul.f32 %v1022, 0.00048351288
      %v1071 = vmul.f32 %v1023, 0.00048351288
      %v1072 = vmul.f32 %v1024, 0.00048351288
      %v1073 = vsub.f32 %v1041, %v1057
      %v1074 = vsub.f32 %v1042, %v1058
      %v1075 = vsub.f32 %v1043, %v1059
      %v1076 = vsub.f32 %v1044, %v1060
      %v1077 = vsub.f32 %v1045, %v1061
      %v1078 = vsub.f32 %v1046, %v1062
      %v1079 = vsub.f32 %v1047, %v1063
      %v1080 = vsub.f32 %v1048, %v1064
      %v1081 = vsub.f32 %v1049, %v1065
      %v1082 = vsub.f32 %v1050, %v1066
      %v1083 = vsub.f32 %v1051, %v1067
      %v1084 = vsub.f32 %v1052, %v1068
      %v1085 = vsub.f32 %v1053, %v1069
      %v1086 = vsub.f32 %v1054, %v1070
      %v1087 = vsub.f32 %v1055, %v1071
      %v1088 = vsub.f32 %v1056, %v1072
      %v1089 = vmul.f32 %v1009, 3.138557e-07
      %v1090 = vmul.f32 %v1010, 3.138557e-07
      %v1091 = vmul.f32 %v1011, 3.138557e-07
      %v1092 = vmul.f32 %v1012, 3.138557e-07
      %v1093 = vmul.f32 %v1013, 3.138557e-07
      %v1094 = vmul.f32 %v1014, 3.138557e-07
      %v1095 = vmul.f32 %v1015, 3.138557e-07
      %v1096 = vmul.f32 %v1016, 3.138557e-07
      %v1097 = vmul.f32 %v1017, 3.138557e-07
      %v1098 = vmul.f32 %v1018, 3.138557e-07
      %v1099 = vmul.f32 %v1019, 3.138557e-07
      %v1100 = vmul.f32 %v1020, 3.138557e-07
      %v1101 = vmul.f32 %v1021, 3.138557e-07
      %v1102 = vmul.f32 %v1022, 3.138557e-07
      %v1103 = vmul.f32 %v1023, 3.138557e-07
      %v1104 = vmul.f32 %v1024, 3.138557e-07
      %v1105 = vsub.f32 %v1073, %v1089
      %v1106 = vsub.f32 %v1074, %v1090
      %v1107 = vsub.f32 %v1075, %v1091
      %v1108 = vsub.f32 %v1076, %v1092
      %v1109 = vsub.f32 %v1077, %v1093
      %v1110 = vsub.f32 %v1078, %v1094
      %v1111 = vsub.f32 %v1079, %v1095
      %v1112 = vsub.f32 %v1080, %v1096
      %v1113 = vsub.f32 %v1081, %v1097
      %v1114 = vsub.f32 %v1082, %v1098
      %v1115 = vsub.f32 %v1083, %v1099
      %v1116 = vsub.f32 %v1084, %v1100
      %v1117 = vsub.f32 %v1085, %v1101
      %v1118 = vsub.f32 %v1086, %v1102
      %v1119 = vsub.f32 %v1087, %v1103
      %v1120 = vsub.f32 %v1088, %v1104
      %v1121 = vmul.f32 %v1105, %v1105
      %v1122 = vmul.f32 %v1106, %v1106
      %v1123 = vmul.f32 %v1107, %v1107
      %v1124 = vmul.f32 %v1108, %v1108
      %v1125 = vmul.f32 %v1109, %v1109
      %v1126 = vmul.f32 %v1110, %v1110
      %v1127 = vmul.f32 %v1111, %v1111
      %v1128 = vmul.f32 %v1112, %v1112
      %v1129 = vmul.f32 %v1113, %v1113
      %v1130 = vmul.f32 %v1114, %v1114
      %v1131 = vmul.f32 %v1115, %v1115
      %v1132 = vmul.f32 %v1116, %v1116
      %v1133 = vmul.f32 %v1117, %v1117
      %v1134 = vmul.f32 %v1118, %v1118
      %v1135 = vmul.f32 %v1119, %v1119
      %v1136 = vmul.f32 %v1120, %v1120
      %v1137 = vmul.f32 %v1121, -0.00019515296
      %v1138 = vmul.f32 %v1122, -0.00019515296
      %v1139 = vmul.f32 %v1123, -0.00019515296
      %v1140 = vmul.f32 %v1124, -0.00019515296
      %v1141 = vmul.f32 %v1125, -0.00019515296
      %v1142 = vmul.f32 %v1126, -0.00019515296
      %v1143 = vmul.f32 %v1127, -0.00019515296
      %v1144 = vmul.f32 %v1128, -0.00019515296
      %v1145 = vmul.f32 %v1129, -0.00019515296
      %v1146 = vmul.f32 %v1130, -0.00019515296
      %v1147 = vmul.f32 %v1131, -0.00019515296
      %v1148 = vmul.f32 %v1132, -0.00019515296
      %v1149 = vmul.f32 %v1133, -0.00019515296
      %v1150 = vmul.f32 %v1134, -0.00019515296
      %v1151 = vmul.f32 %v1135, -0.00019515296
      %v1152 = vmul.f32 %v1136, -0.00019515296
      %v1153 = vadd.f32 %v1137, 0.008332161
      %v1154 = vadd.f32 %v1138, 0.008332161
      %v1155 = vadd.f32 %v1139, 0.008332161
      %v1156 = vadd.f32 %v1140, 0.008332161
      %v1157 = vadd.f32 %v1141, 0.008332161
      %v1158 = vadd.f32 %v1142, 0.008332161
      %v1159 = vadd.f32 %v1143, 0.008332161
      %v1160 = vadd.f32 %v1144, 0.008332161
      %v1161 = vadd.f32 %v1145, 0.008332161
      %v1162 = vadd.f32 %v1146, 0.008332161
      %v1163 = vadd.f32 %v1147, 0.008332161
      %v1164 = vadd.f32 %v1148, 0.008332161
      %v1165 = vadd.f32 %v1149, 0.008332161
      %v1166 = vadd.f32 %v1150, 0.008332161
      %v1167 = vadd.f32 %v1151, 0.008332161
      %v1168 = vadd.f32 %v1152, 0.008332161
      %v1169 = vmul.f32 %v1153, %v1121
      %v1170 = vmul.f32 %v1154, %v1122
      %v1171 = vmul.f32 %v1155, %v1123
      %v1172 = vmul.f32 %v1156, %v1124
      %v1173 = vmul.f32 %v1157, %v1125
      %v1174 = vmul.f32 %v1158, %v1126
      %v1175 = vmul.f32 %v1159, %v1127
      %v1176 = vmul.f32 %v1160, %v1128
      %v1177 = vmul.f32 %v1161, %v1129
      %v1178 = vmul.f32 %v1162, %v1130
      %v1179 = vmul.f32 %v1163, %v1131
      %v1180 = vmul.f32 %v1164, %v1132
      %v1181 = vmul.f32 %v1165, %v1133
      %v1182 = vmul.f32 %v1166, %v1134
      %v1183 = vmul.f32 %v1167, %v1135
      %v1184 = vmul.f32 %v1168, %v1136
      %v1185 = vsub.f32 %v1169, 0.16666655
      %v1186 = vsub.f32 %v1170, 0.16666655
      %v1187 = vsub.f32 %v1171, 0.16666655
      %v1188 = vsub.f32 %v1172, 0.16666655
      %v1189 = vsub.f32 %v1173, 0.16666655
      %v1190 = vsub.f32 %v1174, 0.16666655
      %v1191 = vsub.f32 %v1175, 0.16666655
      %v1192 = vsub.f32 %v1176, 0.16666655
      %v1193 = vsub.f32 %v1177, 0.16666655
      %v1194 = vsub.f32 %v1178, 0.16666655
      %v1195 = vsub.f32 %v1179, 0.16666655
      %v1196 = vsub.f32 %v1180, 0.16666655
      %v1197 = vsub.f32 %v1181, 0.16666655
      %v1198 = vsub.f32 %v1182, 0.16666655
      %v1199 = vsub.f32 %v1183, 0.16666655
      %v1200 = vsub.f32 %v1184, 0.16666655
      %v1201 = vmul.f32 %v1185, %v1121
      %v1202 = vmul.f32 %v1186, %v1122
      %v1203 = vmul.f32 %v1187, %v1123
      %v1204 = vmul.f32 %v1188, %v1124
      %v1205 = vmul.f32 %v1189, %v1125
      %v1206 = vmul.f32 %v1190, %v1126
      %v1207 = vmul.f32 %v1191, %v1127
      %v1208 = vmul.f32 %v1192, %v1128
      %v1209 = vmul.f32 %v1193, %v1129
      %v1210 = vmul.f32 %v1194, %v1130
      %v1211 = vmul.f32 %v1195, %v1131
      %v1212 = vmul.f32 %v1196, %v1132
      %v1213 = vmul.f32 %v1197, %v1133
      %v1214 = vmul.f32 %v1198, %v1134
      %v1215 = vmul.f32 %v1199, %v1135
      %v1216 = vmul.f32 %v1200, %v1136
      %v1217 = vmul.f32 %v1201, %v1105
      %v1218 = vmul.f32 %v1202, %v1106
      %v1219 = vmul.f32 %v1203, %v1107
      %v1220 = vmul.f32 %v1204, %v1108
      %v1221 = vmul.f32 %v1205, %v1109
      %v1222 = vmul.f32 %v1206, %v1110
      %v1223 = vmul.f32 %v1207, %v1111
      %v1224 = vmul.f32 %v1208, %v1112
      %v1225 = vmul.f32 %v1209, %v1113
      %v1226 = vmul.f32 %v1210, %v1114
      %v1227 = vmul.f32 %v1211, %v1115
      %v1228 = vmul.f32 %v1212, %v1116
      %v1229 = vmul.f32 %v1213, %v1117
      %v1230 = vmul.f32 %v1214, %v1118
      %v1231 = vmul.f32 %v1215, %v1119
      %v1232 = vmul.f32 %v1216, %v1120
      %v1233 = vadd.f32 %v1217, %v1105
      %v1234 = vadd.f32 %v1218, %v1106
      %v1235 = vadd.f32 %v1219, %v1107
      %v1236 = vadd.f32 %v1220, %v1108
      %v1237 = vadd.f32 %v1221, %v1109
      %v1238 = vadd.f32 %v1222, %v1110
      %v1239 = vadd.f32 %v1223, %v1111
      %v1240 = vadd.f32 %v1224, %v1112
      %v1241 = vadd.f32 %v1225, %v1113
      %v1242 = vadd.f32 %v1226, %v1114
      %v1243 = vadd.f32 %v1227, %v1115
      %v1244 = vadd.f32 %v1228, %v1116
      %v1245 = vadd.f32 %v1229, %v1117
      %v1246 = vadd.f32 %v1230, %v1118
      %v1247 = vadd.f32 %v1231, %v1119
      %v1248 = vadd.f32 %v1232, %v1120
      %v1249 = vmul.f32 %v1121, 2.4433157e-05
      %v1250 = vmul.f32 %v1122, 2.4433157e-05
      %v1251 = vmul.f32 %v1123, 2.4433157e-05
      %v1252 = vmul.f32 %v1124, 2.4433157e-05
      %v1253 = vmul.f32 %v1125, 2.4433157e-05
      %v1254 = vmul.f32 %v1126, 2.4433157e-05
      %v1255 = vmul.f32 %v1127, 2.4433157e-05
      %v1256 = vmul.f32 %v1128, 2.4433157e-05
      %v1257 = vmul.f32 %v1129, 2.4433157e-05
      %v1258 = vmul.f32 %v1130, 2.4433157e-05
      %v1259 = vmul.f32 %v1131, 2.4433157e-05
      %v1260 = vmul.f32 %v1132, 2.4433157e-05
      %v1261 = vmul.f32 %v1133, 2.4433157e-05
      %v1262 = vmul.f32 %v1134, 2.4433157e-05
      %v1263 = vmul.f32 %v1135, 2.4433157e-05
      %v1264 = vmul.f32 %v1136, 2.4433157e-05
      %v1265 = vsub.f32 %v1249, 0.0013887316
      %v1266 = vsub.f32 %v1250, 0.0013887316
      %v1267 = vsub.f32 %v1251, 0.0013887316
      %v1268 = vsub.f32 %v1252, 0.0013887316
      %v1269 = vsub.f32 %v1253, 0.0013887316
      %v1270 = vsub.f32 %v1254, 0.0013887316
      %v1271 = vsub.f32 %v1255, 0.0013887316
      %v1272 = vsub.f32 %v1256, 0.0013887316
      %v1273 = vsub.f32 %v1257, 0.0013887316
      %v1274 = vsub.f32 %v1258, 0.0013887316
      %v1275 = vsub.f32 %v1259, 0.0013887316
      %v1276 = vsub.f32 %v1260, 0.0013887316
      %v1277 = vsub.f32 %v1261, 0.0013887316
      %v1278 = vsub.f32 %v1262, 0.0013887316
      %v1279 = vsub.f32 %v1263, 0.0013887316
      %v1280 = vsub.f32 %v1264, 0.0013887316
      %v1281 = vmul.f32 %v1265, %v1121
      %v1282 = vmul.f32 %v1266, %v1122
      %v1283 = vmul.f32 %v1267, %v1123
      %v1284 = vmul.f32 %v1268, %v1124
      %v1285 = vmul.f32 %v1269, %v1125
      %v1286 = vmul.f32 %v1270, %v1126
      %v1287 = vmul.f32 %v1271, %v1127
      %v1288 = vmul.f32 %v1272, %v1128
      %v1289 = vmul.f32 %v1273, %v1129
      %v1290 = vmul.f32 %v1274, %v1130
      %v1291 = vmul.f32 %v1275, %v1131
      %v1292 = vmul.f32 %v1276, %v1132
      %v1293 = vmul.f32 %v1277, %v1133
      %v1294 = vmul.f32 %v1278, %v1134
      %v1295 = vmul.f32 %v1279, %v1135
      %v1296 = vmul.f32 %v1280, %v1136
      %v1297 = vadd.f32 %v1281, 0.041666646
      %v1298 = vadd.f32 %v1282, 0.041666646
      %v1299 = vadd.f32 %v1283, 0.041666646
      %v1300 = vadd.f32 %v1284, 0.041666646
      %v1301 = vadd.f32 %v1285, 0.041666646
      %v1302 = vadd.f32 %v1286, 0.041666646
      %v1303 = vadd.f32 %v1287, 0.041666646
      %v1304 = vadd.f32 %v1288, 0.041666646
      %v1305 = vadd.f32 %v1289, 0.041666646
      %v1306 = vadd.f32 %v1290, 0.041666646
      %v1307 = vadd.f32 %v1291, 0.041666646
      %v1308 = vadd.f32 %v1292, 0.041666646
      %v1309 = vadd.f32 %v1293, 0.041666646
      %v1310 = vadd.f32 %v1294, 0.041666646
      %v1311 = vadd.f32 %v1295, 0.041666646
      %v1312 = vadd.f32 %v1296, 0.041666646
      %v1313 = vmul.f32 %v1297, %v1121
      %v1314 = vmul.f32 %v1298, %v1122
      %v1315 = vmul.f32 %v1299, %v1123
      %v1316 = vmul.f32 %v1300, %v1124
      %v1317 = vmul.f32 %v1301, %v1125
      %v1318 = vmul.f32 %v1302, %v1126
      %v1319 = vmul.f32 %v1303, %v1127
      %v1320 = vmul.f32 %v1304, %v1128
      %v1321 = vmul.f32 %v1305, %v1129
      %v1322 = vmul.f32 %v1306, %v1130
      %v1323 = vmul.f32 %v1307, %v1131
      %v1324 = vmul.f32 %v1308, %v1132
      %v1325 = vmul.f32 %v1309, %v1133
      %v1326 = vmul.f32 %v1310, %v1134
      %v1327 = vmul.f32 %v1311, %v1135
      %v1328 = vmul.f32 %v1312, %v1136
      %v1329 = vmul.f32 %v1313, %v1121
      %v1330 = vmul.f32 %v1314, %v1122
      %v1331 = vmul.f32 %v1315, %v1123
      %v1332 = vmul.f32 %v1316, %v1124
      %v1333 = vmul.f32 %v1317, %v1125
      %v1334 = vmul.f32 %v1318, %v1126
      %v1335 = vmul.f32 %v1319, %v1127
      %v1336 = vmul.f32 %v1320, %v1128
      %v1337 = vmul.f32 %v1321, %v1129
      %v1338 = vmul.f32 %v1322, %v1130
      %v1339 = vmul.f32 %v1323, %v1131
      %v1340 = vmul.f32 %v1324, %v1132
      %v1341 = vmul.f32 %v1325, %v1133
      %v1342 = vmul.f32 %v1326, %v1134
      %v1343 = vmul.f32 %v1327, %v1135
      %v1344 = vmul.f32 %v1328, %v1136
      %v1345 = vmul.f32 %v1121, 0.5
      %v1346 = vmul.f32 %v1122, 0.5
      %v1347 = vmul.f32 %v1123, 0.5
      %v1348 = vmul.f32 %v1124, 0.5
      %v1349 = vmul.f32 %v1125, 0.5
      %v1350 = vmul.f32 %v1126, 0.5
      %v1351 = vmul.f32 %v1127, 0.5
      %v1352 = vmul.f32 %v1128, 0.5
      %v1353 = vmul.f32 %v1129, 0.5
      %v1354 = vmul.f32 %v1130, 0.5
      %v1355 = vmul.f32 %v1131, 0.5
      %v1356 = vmul.f32 %v1132, 0.5
      %v1357 = vmul.f32 %v1133, 0.5
      %v1358 = vmul.f32 %v1134, 0.5
      %v1359 = vmul.f32 %v1135, 0.5
      %v1360 = vmul.f32 %v1136, 0.5
      %v1361 = vsub.f32 %v1329, %v1345
      %v1362 = vsub.f32 %v1330, %v1346
      %v1363 = vsub.f32 %v1331, %v1347
      %v1364 = vsub.f32 %v1332, %v1348
      %v1365 = vsub.f32 %v1333, %v1349
      %v1366 = vsub.f32 %v1334, %v1350
      %v1367 = vsub.f32 %v1335, %v1351
      %v1368 = vsub.f32 %v1336, %v1352
      %v1369 = vsub.f32 %v1337, %v1353
      %v1370 = vsub.f32 %v1338, %v1354
      %v1371 = vsub.f32 %v1339, %v1355
      %v1372 = vsub.f32 %v1340, %v1356
      %v1373 = vsub.f32 %v1341, %v1357
      %v1374 = vsub.f32 %v1342, %v1358
      %v1375 = vsub.f32 %v1343, %v1359
      %v1376 = vsub.f32 %v1344, %v1360
      %v1377 = vadd.f32 %v1361, 1.0
      %v1378 = vadd.f32 %v1362, 1.0
      %v1379 = vadd.f32 %v1363, 1.0
      %v1380 = vadd.f32 %v1364, 1.0
      %v1381 = vadd.f32 %v1365, 1.0
      %v1382 = vadd.f32 %v1366, 1.0
      %v1383 = vadd.f32 %v1367, 1.0
      %v1384 = vadd.f32 %v1368, 1.0
      %v1385 = vadd.f32 %v1369, 1.0
      %v1386 = vadd.f32 %v1370, 1.0
      %v1387 = vadd.f32 %v1371, 1.0
      %v1388 = vadd.f32 %v1372, 1.0
      %v1389 = vadd.f32 %v1373, 1.0
      %v1390 = vadd.f32 %v1374, 1.0
      %v1391 = vadd.f32 %v1375, 1.0
      %v1392 = vadd.f32 %v1376, 1.0
      %v1393 = vcvt.f32.s32.to.zero.pseudo %v1009
      %v1394 = vcvt.f32.s32.to.zero.pseudo %v1010
      %v1395 = vcvt.f32.s32.to.zero.pseudo %v1011
      %v1396 = vcvt.f32.s32.to.zero.pseudo %v1012
      %v1397 = vcvt.f32.s32.to.zero.pseudo %v1013
      %v1398 = vcvt.f32.s32.to.zero.pseudo %v1014
      %v1399 = vcvt.f32.s32.to.zero.pseudo %v1015
      %v1400 = vcvt.f32.s32.to.zero.pseudo %v1016
      %v1401 = vcvt.f32.s32.to.zero.pseudo %v1017
      %v1402 = vcvt.f32.s32.to.zero.pseudo %v1018
      %v1403 = vcvt.f32.s32.to.zero.pseudo %v1019
      %v1404 = vcvt.f32.s32.to.zero.pseudo %v1020
      %v1405 = vcvt.f32.s32.to.zero.pseudo %v1021
      %v1406 = vcvt.f32.s32.to.zero.pseudo %v1022
      %v1407 = vcvt.f32.s32.to.zero.pseudo %v1023
      %v1408 = vcvt.f32.s32.to.zero.pseudo %v1024
      %v1409 = vand.u32 %v1393, 1
      %v1410 = vand.u32 %v1394, 1
      %v1411 = vand.u32 %v1395, 1
      %v1412 = vand.u32 %v1396, 1
      %v1413 = vand.u32 %v1397, 1
      %v1414 = vand.u32 %v1398, 1
      %v1415 = vand.u32 %v1399, 1
      %v1416 = vand.u32 %v1400, 1
      %v1417 = vand.u32 %v1401, 1
      %v1418 = vand.u32 %v1402, 1
      %v1419 = vand.u32 %v1403, 1
      %v1420 = vand.u32 %v1404, 1
      %v1421 = vand.u32 %v1405, 1
      %v1422 = vand.u32 %v1406, 1
      %v1423 = vand.u32 %v1407, 1
      %v1424 = vand.u32 %v1408, 1
      %vm1425 = vcmp.eq.s32.totalorder %v1409, 1
      %vm1426 = vcmp.eq.s32.totalorder %v1410, 1
      %vm1427 = vcmp.eq.s32.totalorder %v1411, 1
      %vm1428 = vcmp.eq.s32.totalorder %v1412, 1
      %vm1429 = vcmp.eq.s32.totalorder %v1413, 1
      %vm1430 = vcmp.eq.s32.totalorder %v1414, 1
      %vm1431 = vcmp.eq.s32.totalorder %v1415, 1
      %vm1432 = vcmp.eq.s32.totalorder %v1416, 1
      %vm1433 = vcmp.eq.s32.totalorder %v1417, 1
      %vm1434 = vcmp.eq.s32.totalorder %v1418, 1
      %vm1435 = vcmp.eq.s32.totalorder %v1419, 1
      %vm1436 = vcmp.eq.s32.totalorder %v1420, 1
      %vm1437 = vcmp.eq.s32.totalorder %v1421, 1
      %vm1438 = vcmp.eq.s32.totalorder %v1422, 1
      %vm1439 = vcmp.eq.s32.totalorder %v1423, 1
      %vm1440 = vcmp.eq.s32.totalorder %v1424, 1
      %v1441 = vsel %vm1425, %v1377, %v1233
      %v1442 = vsel %vm1426, %v1378, %v1234
      %v1443 = vsel %vm1427, %v1379, %v1235
      %v1444 = vsel %vm1428, %v1380, %v1236
      %v1445 = vsel %vm1429, %v1381, %v1237
      %v1446 = vsel %vm1430, %v1382, %v1238
      %v1447 = vsel %vm1431, %v1383, %v1239
      %v1448 = vsel %vm1432, %v1384, %v1240
      %v1449 = vsel %vm1433, %v1385, %v1241
      %v1450 = vsel %vm1434, %v1386, %v1242
      %v1451 = vsel %vm1435, %v1387, %v1243
      %v1452 = vsel %vm1436, %v1388, %v1244
      %v1453 = vsel %vm1437, %v1389, %v1245
      %v1454 = vsel %vm1438, %v1390, %v1246
      %v1455 = vsel %vm1439, %v1391, %v1247
      %v1456 = vsel %vm1440, %v1392, %v1248
      %v1457 = vsel %vm1425, %v1233, %v1377
      %v1458 = vsel %vm1426, %v1234, %v1378
      %v1459 = vsel %vm1427, %v1235, %v1379
      %v1460 = vsel %vm1428, %v1236, %v1380
      %v1461 = vsel %vm1429, %v1237, %v1381
      %v1462 = vsel %vm1430, %v1238, %v1382
      %v1463 = vsel %vm1431, %v1239, %v1383
      %v1464 = vsel %vm1432, %v1240, %v1384
      %v1465 = vsel %vm1433, %v1241, %v1385
      %v1466 = vsel %vm1434, %v1242, %v1386
      %v1467 = vsel %vm1435, %v1243, %v1387
      %v1468 = vsel %vm1436, %v1244, %v1388
      %v1469 = vsel %vm1437, %v1245, %v1389
      %v1470 = vsel %vm1438, %v1246, %v1390
      %v1471 = vsel %vm1439, %v1247, %v1391
      %v1472 = vsel %vm1440, %v1248, %v1392
      %v1473 = vand.u32 %v1393, 2
      %v1474 = vand.u32 %v1394, 2
      %v1475 = vand.u32 %v1395, 2
      %v1476 = vand.u32 %v1396, 2
      %v1477 = vand.u32 %v1397, 2
      %v1478 = vand.u32 %v1398, 2
      %v1479 = vand.u32 %v1399, 2
      %v1480 = vand.u32 %v1400, 2
      %v1481 = vand.u32 %v1401, 2
      %v1482 = vand.u32 %v1402, 2
      %v1483 = vand.u32 %v1403, 2
      %v1484 = vand.u32 %v1404, 2
      %v1485 = vand.u32 %v1405, 2
      %v1486 = vand.u32 %v1406, 2
      %v1487 = vand.u32 %v1407, 2
      %v1488 = vand.u32 %v1408, 2
      %vm1489 = vcmp.eq.s32.totalorder %v1473, 2
      %vm1490 = vcmp.eq.s32.totalorder %v1474, 2
      %vm1491 = vcmp.eq.s32.totalorder %v1475, 2
      %vm1492 = vcmp.eq.s32.totalorder %v1476, 2
      %vm1493 = vcmp.eq.s32.totalorder %v1477, 2
      %vm1494 = vcmp.eq.s32.totalorder %v1478, 2
      %vm1495 = vcmp.eq.s32.totalorder %v1479, 2
      %vm1496 = vcmp.eq.s32.totalorder %v1480, 2
      %vm1497 = vcmp.eq.s32.totalorder %v1481, 2
      %vm1498 = vcmp.eq.s32.totalorder %v1482, 2
      %vm1499 = vcmp.eq.s32.totalorder %v1483, 2
      %vm1500 = vcmp.eq.s32.totalorder %v1484, 2
      %vm1501 = vcmp.eq.s32.totalorder %v1485, 2
      %vm1502 = vcmp.eq.s32.totalorder %v1486, 2
      %vm1503 = vcmp.eq.s32.totalorder %v1487, 2
      %vm1504 = vcmp.eq.s32.totalorder %v1488, 2
      %v1505 = vadd.s32 %v1393, 1
      %v1506 = vadd.s32 %v1394, 1
      %v1507 = vadd.s32 %v1395, 1
      %v1508 = vadd.s32 %v1396, 1
      %v1509 = vadd.s32 %v1397, 1
      %v1510 = vadd.s32 %v1398, 1
      %v1511 = vadd.s32 %v1399, 1
      %v1512 = vadd.s32 %v1400, 1
      %v1513 = vadd.s32 %v1401, 1
      %v1514 = vadd.s32 %v1402, 1
      %v1515 = vadd.s32 %v1403, 1
      %v1516 = vadd.s32 %v1404, 1
      %v1517 = vadd.s32 %v1405, 1
      %v1518 = vadd.s32 %v1406, 1
      %v1519 = vadd.s32 %v1407, 1
      %v1520 = vadd.s32 %v1408, 1
      %v1521 = vand.u32 %v1505, 2
      %v1522 = vand.u32 %v1506, 2
      %v1523 = vand.u32 %v1507, 2
      %v1524 = vand.u32 %v1508, 2
      %v1525 = vand.u32 %v1509, 2
      %v1526 = vand.u32 %v1510, 2
      %v1527 = vand.u32 %v1511, 2
      %v1528 = vand.u32 %v1512, 2
      %v1529 = vand.u32 %v1513, 2
      %v1530 = vand.u32 %v1514, 2
      %v1531 = vand.u32 %v1515, 2
      %v1532 = vand.u32 %v1516, 2
      %v1533 = vand.u32 %v1517, 2
      %v1534 = vand.u32 %v1518, 2
      %v1535 = vand.u32 %v1519, 2
      %v1536 = vand.u32 %v1520, 2
      %vm1537 = vcmp.eq.s32.totalorder %v1521, 2
      %vm1538 = vcmp.eq.s32.totalorder %v1522, 2
      %vm1539 = vcmp.eq.s32.totalorder %v1523, 2
      %vm1540 = vcmp.eq.s32.totalorder %v1524, 2
      %vm1541 = vcmp.eq.s32.totalorder %v1525, 2
      %vm1542 = vcmp.eq.s32.totalorder %v1526, 2
      %vm1543 = vcmp.eq.s32.totalorder %v1527, 2
      %vm1544 = vcmp.eq.s32.totalorder %v1528, 2
      %vm1545 = vcmp.eq.s32.totalorder %v1529, 2
      %vm1546 = vcmp.eq.s32.totalorder %v1530, 2
      %vm1547 = vcmp.eq.s32.totalorder %v1531, 2
      %vm1548 = vcmp.eq.s32.totalorder %v1532, 2
      %vm1549 = vcmp.eq.s32.totalorder %v1533, 2
      %vm1550 = vcmp.eq.s32.totalorder %v1534, 2
      %vm1551 = vcmp.eq.s32.totalorder %v1535, 2
      %vm1552 = vcmp.eq.s32.totalorder %v1536, 2
      %v1553 = vsub.f32 0.0, %v1441
      %v1554 = vsub.f32 0.0, %v1442
      %v1555 = vsub.f32 0.0, %v1443
      %v1556 = vsub.f32 0.0, %v1444
      %v1557 = vsub.f32 0.0, %v1445
      %v1558 = vsub.f32 0.0, %v1446
      %v1559 = vsub.f32 0.0, %v1447
      %v1560 = vsub.f32 0.0, %v1448
      %v1561 = vsub.f32 0.0, %v1449
      %v1562 = vsub.f32 0.0, %v1450
      %v1563 = vsub.f32 0.0, %v1451
      %v1564 = vsub.f32 0.0, %v1452
      %v1565 = vsub.f32 0.0, %v1453
      %v1566 = vsub.f32 0.0, %v1454
      %v1567 = vsub.f32 0.0, %v1455
      %v1568 = vsub.f32 0.0, %v1456
      %v1569 = vsel %vm1489, %v1553, %v1441
      %v1570 = vsel %vm1490, %v1554, %v1442
      %v1571 = vsel %vm1491, %v1555, %v1443
      %v1572 = vsel %vm1492, %v1556, %v1444
      %v1573 = vsel %vm1493, %v1557, %v1445
      %v1574 = vsel %vm1494, %v1558, %v1446
      %v1575 = vsel %vm1495, %v1559, %v1447
      %v1576 = vsel %vm1496, %v1560, %v1448
      %v1577 = vsel %vm1497, %v1561, %v1449
      %v1578 = vsel %vm1498, %v1562, %v1450
      %v1579 = vsel %vm1499, %v1563, %v1451
      %v1580 = vsel %vm1500, %v1564, %v1452
      %v1581 = vsel %vm1501, %v1565, %v1453
      %v1582 = vsel %vm1502, %v1566, %v1454
      %v1583 = vsel %vm1503, %v1567, %v1455
      %v1584 = vsel %vm1504, %v1568, %v1456
      %v1585 = vsub.f32 0.0, %v1457
      %v1586 = vsub.f32 0.0, %v1458
      %v1587 = vsub.f32 0.0, %v1459
      %v1588 = vsub.f32 0.0, %v1460
      %v1589 = vsub.f32 0.0, %v1461
      %v1590 = vsub.f32 0.0, %v1462
      %v1591 = vsub.f32 0.0, %v1463
      %v1592 = vsub.f32 0.0, %v1464
      %v1593 = vsub.f32 0.0, %v1465
      %v1594 = vsub.f32 0.0, %v1466
      %v1595 = vsub.f32 0.0, %v1467
      %v1596 = vsub.f32 0.0, %v1468
      %v1597 = vsub.f32 0.0, %v1469
      %v1598 = vsub.f32 0.0, %v1470
      %v1599 = vsub.f32 0.0, %v1471
      %v1600 = vsub.f32 0.0, %v1472
      %v1601 = vsel %vm1537, %v1585, %v1457
      %v1602 = vsel %vm1538, %v1586, %v1458
      %v1603 = vsel %vm1539, %v1587, %v1459
      %v1604 = vsel %vm1540, %v1588, %v1460
      %v1605 = vsel %vm1541, %v1589, %v1461
      %v1606 = vsel %vm1542, %v1590, %v1462
      %v1607 = vsel %vm1543, %v1591, %v1463
      %v1608 = vsel %vm1544, %v1592, %v1464
      %v1609 = vsel %vm1545, %v1593, %v1465
      %v1610 = vsel %vm1546, %v1594, %v1466
      %v1611 = vsel %vm1547, %v1595, %v1467
      %v1612 = vsel %vm1548, %v1596, %v1468
      %v1613 = vsel %vm1549, %v1597, %v1469
      %v1614 = vsel %vm1550, %v1598, %v1470
      %v1615 = vsel %vm1551, %v1599, %v1471
      %v1616 = vsel %vm1552, %v1600, %v1472
      %v1617 = vadd.f32 %v961, %v1601
      %v1618 = vadd.f32 %v962, %v1602
      %v1619 = vadd.f32 %v963, %v1603
      %v1620 = vadd.f32 %v964, %v1604
      %v1621 = vadd.f32 %v965, %v1605
      %v1622 = vadd.f32 %v966, %v1606
      %v1623 = vadd.f32 %v967, %v1607
      %v1624 = vadd.f32 %v968, %v1608
      %v1625 = vadd.f32 %v969, %v1609
      %v1626 = vadd.f32 %v970, %v1610
      %v1627 = vadd.f32 %v971, %v1611
      %v1628 = vadd.f32 %v972, %v1612
      %v1629 = vadd.f32 %v973, %v1613
      %v1630 = vadd.f32 %v974, %v1614
      %v1631 = vadd.f32 %v975, %v1615
      %v1632 = vadd.f32 %v976, %v1616
      %v1633 = vmul.f32 %v1617, 2.0
      %v1634 = vmul.f32 %v1618, 2.0
      %v1635 = vmul.f32 %v1619, 2.0
      %v1636 = vmul.f32 %v1620, 2.0
      %v1637 = vmul.f32 %v1621, 2.0
      %v1638 = vmul.f32 %v1622, 2.0
      %v1639 = vmul.f32 %v1623, 2.0
      %v1640 = vmul.f32 %v1624, 2.0
      %v1641 = vmul.f32 %v1625, 2.0
      %v1642 = vmul.f32 %v1626, 2.0
      %v1643 = vmul.f32 %v1627, 2.0
      %v1644 = vmul.f32 %v1628, 2.0
      %v1645 = vmul.f32 %v1629, 2.0
      %v1646 = vmul.f32 %v1630, 2.0
      %v1647 = vmul.f32 %v1631, 2.0
      %v1648 = vmul.f32 %v1632, 2.0
      %v1649 = vmul.f32 %v241, %v929
      %v1650 = vmul.f32 %v242, %v930
      %v1651 = vmul.f32 %v243, %v931
      %v1652 = vmul.f32 %v244, %v932
      %v1653 = vmul.f32 %v245, %v933
      %v1654 = vmul.f32 %v246, %v934
      %v1655 = vmul.f32 %v247, %v935
      %v1656 = vmul.f32 %v248, %v936
      %v1657 = vmul.f32 %v249, %v937
      %v1658 = vmul.f32 %v250, %v938
      %v1659 = vmul.f32 %v251, %v939
      %v1660 = vmul.f32 %v252, %v940
      %v1661 = vmul.f32 %v253, %v941
      %v1662 = vmul.f32 %v254, %v942
      %v1663 = vmul.f32 %v255, %v943
      %v1664 = vmul.f32 %v256, %v944
      %v1665 = vmul.f32 %v257, %v1569
      %v1666 = vmul.f32 %v258, %v1570
      %v1667 = vmul.f32 %v259, %v1571
      %v1668 = vmul.f32 %v260, %v1572
      %v1669 = vmul.f32 %v261, %v1573
      %v1670 = vmul.f32 %v262, %v1574
      %v1671 = vmul.f32 %v263, %v1575
      %v1672 = vmul.f32 %v264, %v1576
      %v1673 = vmul.f32 %v265, %v1577
      %v1674 = vmul.f32 %v266, %v1578
      %v1675 = vmul.f32 %v267, %v1579
      %v1676 = vmul.f32 %v268, %v1580
      %v1677 = vmul.f32 %v269, %v1581
      %v1678 = vmul.f32 %v270, %v1582
      %v1679 = vmul.f32 %v271, %v1583
      %v1680 = vmul.f32 %v272, %v1584
      %v1681 = vadd.f32 %v1649, %v1665
      %v1682 = vadd.f32 %v1650, %v1666
      %v1683 = vadd.f32 %v1651, %v1667
      %v1684 = vadd.f32 %v1652, %v1668
      %v1685 = vadd.f32 %v1653, %v1669
      %v1686 = vadd.f32 %v1654, %v1670
      %v1687 = vadd.f32 %v1655, %v1671
      %v1688 = vadd.f32 %v1656, %v1672
      %v1689 = vadd.f32 %v1657, %v1673
      %v1690 = vadd.f32 %v1658, %v1674
      %v1691 = vadd.f32 %v1659, %v1675
      %v1692 = vadd.f32 %v1660, %v1676
      %v1693 = vadd.f32 %v1661, %v1677
      %v1694 = vadd.f32 %v1662, %v1678
      %v1695 = vadd.f32 %v1663, %v1679
      %v1696 = vadd.f32 %v1664, %v1680
      %v1697 = vmul.f32 %v1681, 4.0
      %v1698 = vmul.f32 %v1682, 4.0
      %v1699 = vmul.f32 %v1683, 4.0
      %v1700 = vmul.f32 %v1684, 4.0
      %v1701 = vmul.f32 %v1685, 4.0
      %v1702 = vmul.f32 %v1686, 4.0
      %v1703 = vmul.f32 %v1687, 4.0
      %v1704 = vmul.f32 %v1688, 4.0
      %v1705 = vmul.f32 %v1689, 4.0
      %v1706 = vmul.f32 %v1690, 4.0
      %v1707 = vmul.f32 %v1691, 4.0
      %v1708 = vmul.f32 %v1692, 4.0
      %v1709 = vmul.f32 %v1693, 4.0
      %v1710 = vmul.f32 %v1694, 4.0
      %v1711 = vmul.f32 %v1695, 4.0
      %v1712 = vmul.f32 %v1696, 4.0
      %v1713 = vsub.f32 %v1633, %v1697
      %v1714 = vsub.f32 %v1634, %v1698
      %v1715 = vsub.f32 %v1635, %v1699
      %v1716 = vsub.f32 %v1636, %v1700
      %v1717 = vsub.f32 %v1637, %v1701
      %v1718 = vsub.f32 %v1638, %v1702
      %v1719 = vsub.f32 %v1639, %v1703
      %v1720 = vsub.f32 %v1640, %v1704
      %v1721 = vsub.f32 %v1641, %v1705
      %v1722 = vsub.f32 %v1642, %v1706
      %v1723 = vsub.f32 %v1643, %v1707
      %v1724 = vsub.f32 %v1644, %v1708
      %v1725 = vsub.f32 %v1645, %v1709
      %v1726 = vsub.f32 %v1646, %v1710
      %v1727 = vsub.f32 %v1647, %v1711
      %v1728 = vsub.f32 %v1648, %v1712
      %1729 = vst [vmem:[%s175] sm:$0xff] %v1713
      %1730 = vst [vmem:[%s175 + $0x8] sm:$0xff] %v1714
      %1731 = vst [vmem:[%s175 + $0x10] sm:$0xff] %v1715
      %1732 = vst [vmem:[%s175 + $0x18] sm:$0xff] %v1716
      %1733 = vst [vmem:[%s175 + $0x20] sm:$0xff] %v1717
      %1734 = vst [vmem:[%s175 + $0x28] sm:$0xff] %v1718
      %1735 = vst [vmem:[%s175 + $0x30] sm:$0xff] %v1719
      %1736 = vst [vmem:[%s175 + $0x38] sm:$0xff] %v1720
      %1737 = vst [vmem:[%s175 + $0x40] sm:$0xff] %v1721
      %1738 = vst [vmem:[%s175 + $0x48] sm:$0xff] %v1722
      %1739 = vst [vmem:[%s175 + $0x50] sm:$0xff] %v1723
      %1740 = vst [vmem:[%s175 + $0x58] sm:$0xff] %v1724
      %1741 = vst [vmem:[%s175 + $0x60] sm:$0xff] %v1725
      %1742 = vst [vmem:[%s175 + $0x68] sm:$0xff] %v1726
      %1743 = vst [vmem:[%s175 + $0x70] sm:$0xff] %v1727
      %1744 = vst [vmem:[%s175 + $0x78] sm:$0xff] %v1728
      %s1745 = smul.u32 2, %s13
      %p1746 = scmp.lt.s32.totalorder %s1745, 3
      %s1747 = scalar_select %p1746, %s1745, 3
      %s1748 = smul.addr %s1747, 8
      %s1749 = smul.addr %s1748, 8
      %s1750 = scalar_lea.vmem %s2, %s1749
      // Predicated region
      $region29: #{func_2_y_forward.1} parent=27 // pred_check
        %p1751 = pneg %p83
      $region30: #{func_2_y_forward.1} parent=27 // pred_check_branch
        %1753 = sbr.rel (%p1751) target = $region32
      $region31: #{func_2_y_forward.1} parent=27 // pred_region
        %s1754 = smul.u32 2, %s13
      $region32: #{func_2_y_forward.1} parent=27 // pred_fallthru
        _
    $region28: #{func_2_y_forward.1} parent=5 // pred_fallthru
      _
    %p1755 = scmp.le.s32.totalorder 2, %s8
    // Predicated region
    $region33: #{func_2_y_forward.1} parent=5 // pred_check
      %p1756 = pneg %p1755
    $region34: #{func_2_y_forward.1} parent=5 // pred_check_branch
      %1758 = sbr.rel (%p1756) target = $region36
    $region35: #{func_2_y_forward.1} parent=5 // pred_region
      %s1759 = ssub.s32 %s8, 2
      // Predicated region
      $region37: #{func_2_y_forward.1} parent=35 // pred_check
        %p1760 = pneg %p89
      $region38: #{func_2_y_forward.1} parent=35 // pred_check_branch
        %1762 = sbr.rel (%p1760) target = $region40
      $region39: #{func_2_y_forward.1} parent=35 // pred_region
        %s1763 = smul.u32 2, %s14
        %p1764 = scmp.lt.s32.totalorder %s1763, 3
        %s1765 = scalar_select %p1764, %s1763, 3
        %s1766 = smul.addr %s1765, 8
        %s1767 = smul.addr %s1766, 8
        %s1768 = scalar_lea.vmem %s2, %s1767
      $region40: #{func_2_y_forward.1} parent=35 // pred_fallthru
        _
    $region36: #{func_2_y_forward.1} parent=5 // pred_fallthru
      _
  $region6: #{func_2_y_forward.1} parent=0 // loop_footer
    %s12 = sadd.s32 1, %s8
  $region7: #{func_2_y_forward.1} parent=0 // loop_footer_branch
    %7 = sbr.rel target = $region3
  $region8: #{func_2_y_forward.1} parent=0 // loop_exit
    _

</llo_original>
